<compile_context>
chip_gen: v6e
topology: v6e:2x2x1
jax: 0.10.0
libtpu: 0.0.40
codegen_flags: <defaults>
</compile_context>

<pallas_src>
import functools

import jax
import jax.numpy as jnp
from jax.experimental import pallas as pl
from jax.experimental.pallas import tpu as pltpu


def get_padding(kernel_size, dilation=1):
    return int((kernel_size * dilation - dilation) / 2)


def _round_up(n, m):
    return ((n + m - 1) // m) * m


# ---------------------------------------------------------------------------
# Fused stage kernel: N dilated branches (+leaky) -> sum -> optional strided
# post conv (+leaky), all in channels-major (C on sublanes, time on lanes).
# ---------------------------------------------------------------------------
def _stage_kernel(*refs, c_in, t_in, pad_max, branch_offs, branch_act,
                  neg_slope, post, l_mid, l_out, l_al):
    """
    refs = (x_ref, w_br_0, ..., w_br_{n-1}, [w_post_ref], o_ref)

    x_ref    : (C_in, T_buf)   input slab for one batch element (true length t_in)
    w_br_i   : (C_out, K_i*C_in + 1)  flattened taps + bias column
    w_post   : (C_fin, 3*C_out + 1)   flattened post-conv taps + bias column
    o_ref    : (C_fin, l_al)   lane-aligned output (zero tail beyond l_out)
    """
    n_br = len(branch_offs)
    x_ref = refs[0]
    w_refs = refs[1:1 + n_br]
    w_post_ref = refs[1 + n_br] if post is not None else None
    o_ref = refs[-1]

    # ---- in-kernel zero padding of the input (no wrapper-level jnp.pad) ----
    x = x_ref[:, :t_in].astype(jnp.float32)                     # (C_in, t_in)
    if pad_max > 0:
        zp = jnp.zeros((c_in, pad_max), jnp.float32)
        x_pad = jnp.concatenate([zp, x, zp], axis=1)            # (C_in, t_in + 2*pad_max)
    else:
        x_pad = x

    ones_row = jnp.ones((1, l_mid), jnp.float32)

    # ---- dilation branches: one big matmul per branch (taps + bias folded) --
    out = None
    for i in range(n_br):
        pieces = [x_pad[:, o:o + l_mid] for o in branch_offs[i]]   # K_i x (C_in, l_mid)
        slab = jnp.concatenate(pieces + [ones_row], axis=0)        # (K_i*C_in+1, l_mid)
        acc = jnp.dot(w_refs[i][...], slab,
                      preferred_element_type=jnp.float32)          # (C_out, l_mid)
        if branch_act:
            acc = jnp.where(acc >= 0, acc, neg_slope * acc)        # per-branch leaky_relu
        out = acc if out is None else out + acc

    # ---- optional post conv (kernel 3, stride s) fused in the same kernel ---
    if post is None:
        y = out                                                    # l_out == l_mid
    else:
        stride, post_pad, c_mid = post
        if post_pad > 0:
            zp2 = jnp.zeros((c_mid, post_pad), jnp.float32)
            out_pad = jnp.concatenate([zp2, out, zp2], axis=1)
        else:
            out_pad = out
        lp1 = l_mid + 2 * post_pad - 2                             # stride-1 post length
        ones2 = jnp.ones((1, lp1), jnp.float32)
        pieces2 = [out_pad[:, k:k + lp1] for k in range(3)]
        slab2 = jnp.concatenate(pieces2 + [ones2], axis=0)         # (3*c_mid+1, lp1)
        y1 = jnp.dot(w_post_ref[...], slab2,
                     preferred_element_type=jnp.float32)           # (C_fin, lp1)
        if stride == 1:
            y = y1                                                 # l_out == lp1
        else:
            # In-register stride decimation before the store: pick every
            # `stride`-th column with a 0/1 matrix on the MXU.  Only the
            # decimated columns are stored to HBM.
            rows = jax.lax.broadcasted_iota(jnp.int32, (lp1, l_out), 0)
            cols = jax.lax.broadcasted_iota(jnp.int32, (lp1, l_out), 1)
            sel = (rows == cols * stride).astype(jnp.float32)
            y = jnp.dot(y1, sel, preferred_element_type=jnp.float32)
        y = jnp.where(y >= 0, y, neg_slope * y)                    # post-conv leaky_relu

    # ---- lane-dense (128-multiple) store, zero tail --------------------------
    if l_al > l_out:
        y = jnp.concatenate(
            [y, jnp.zeros((y.shape[0], l_al - l_out), jnp.float32)], axis=1)
    o_ref[...] = y.astype(o_ref.dtype)


# ---------------------------------------------------------------------------
# Wrapper: one fused pallas_call per stage.
# ---------------------------------------------------------------------------
def _fused_stage(x, t_in, branch_ws, branch_kd, post_w, post_cfg, *,
                 branch_act=True, neg_slope=0.2, out_dtype=jnp.float32):
    """x: (B, C_in, T_buf) with true time length t_in (trailing lanes ignored)."""
    B, c_in, t_buf = x.shape
    assert t_in <= t_buf

    pads = [get_padding(k, d) for k, d in branch_kd]
    pad_max = max(pads)
    l_mids = [t_in + 2 * p - d * (k - 1) for (k, d), p in zip(branch_kd, pads)]
    l_mid = l_mids[0]
    assert all(l == l_mid for l in l_mids), "branch output lengths must match"
    branch_offs = tuple(
        tuple(pad_max - p + kk * d for kk in range(k))
        for (k, d), p in zip(branch_kd, pads))

    c_out_br = branch_ws[0].shape[0]
    if post_cfg is None:
        post = None
        l_out = l_mid
        c_final = c_out_br
        w_inputs = list(branch_ws)
    else:
        stride, post_pad = post_cfg
        post = (stride, post_pad, c_out_br)
        l_out = (l_mid + 2 * post_pad - 3) // stride + 1
        c_final = post_w.shape[0]
        w_inputs = list(branch_ws) + [post_w]
    l_al = _round_up(l_out, 128)

    kernel = functools.partial(
        _stage_kernel, c_in=c_in, t_in=t_in, pad_max=pad_max,
        branch_offs=branch_offs, branch_act=branch_act, neg_slope=neg_slope,
        post=post, l_mid=l_mid, l_out=l_out, l_al=l_al)

    in_specs = [pl.BlockSpec((pl.Squeezed(), c_in, t_buf), lambda b: (b, 0, 0))]
    for w in w_inputs:
        in_specs.append(pl.BlockSpec(w.shape, lambda b: (0, 0)))

    out = pl.pallas_call(
        kernel,
        out_shape=jax.ShapeDtypeStruct((B, c_final, l_al), out_dtype),
        grid=(B,),
        in_specs=in_specs,
        out_specs=pl.BlockSpec((pl.Squeezed(), c_final, l_al),
                               lambda b: (b, 0, 0)),
        compiler_params=pltpu.CompilerParams(
            dimension_semantics=("parallel",)),
    )(x, *w_inputs)
    return out, l_out


# ---------------------------------------------------------------------------
# Parameters (deterministic init; weight_norm is just a reparametrization so
# plain Conv1d weights are used directly).
# ---------------------------------------------------------------------------
def init_conv1d(key, c_in, c_out, k):
    wkey, bkey = jax.random.split(key)
    scale = 1.0 / (c_in * k) ** 0.5
    w = jax.random.uniform(wkey, (c_out, c_in, k), jnp.float32, -scale, scale)
    b = jax.random.uniform(bkey, (c_out,), jnp.float32, -scale, scale)
    return {"w": w, "b": b}


def init_sbd_block(key, segment_dim, strides, filters, kernel_size, dilations):
    filters_in_out = [(segment_dim, filters[0])]
    for i in range(len(filters) - 1):
        filters_in_out.append((filters[i], filters[i + 1]))
    convs = []
    for (ci, co), ks, ds in zip(filters_in_out, kernel_size, dilations):
        d_convs = []
        for k in ks:
            key, sub = jax.random.split(key)
            d_convs.append(init_conv1d(sub, ci, co, k))
        key, sub = jax.random.split(key)
        post = init_conv1d(sub, co, co, 3)
        convs.append({"d_convs": d_convs, "post": post})
    key, sub = jax.random.split(key)
    post = init_conv1d(sub, filters_in_out[-1][1], 1, 3)
    return {"convs": convs, "post": post}


def _aug_weight_cm(w, b):
    """(C_out, C_in, K), (C_out,) -> (C_out, K*C_in + 1) with bias as last column."""
    c_out, c_in, k = w.shape
    wm = jnp.transpose(w, (0, 2, 1)).reshape(c_out, k * c_in)
    return jnp.concatenate([wm, b[:, None]], axis=1)


# ---------------------------------------------------------------------------
# Forward pass (one fused pallas_call per MDC stage + one for the final conv).
# ---------------------------------------------------------------------------
def mdc_stage_forward(params, x, t_in, stride, kernel_size, dilations):
    branch_ws = [_aug_weight_cm(p["w"], p["b"]) for p in params["d_convs"]]
    post_w = _aug_weight_cm(params["post"]["w"], params["post"]["b"])
    # NOTE: PyTorch MDC uses get_padding(_k, _d) with the LAST (_k, _d) of the
    # branch loop for the post conv padding; reproduce that exactly.
    post_pad = get_padding(kernel_size[-1], dilations[-1])
    return _fused_stage(x, t_in, branch_ws, list(zip(kernel_size, dilations)),
                        post_w, (stride, post_pad), branch_act=True)


def sbd_block_forward(params, x, strides, kernel_size, dilations):
    t = x.shape[-1]
    fmap_padded, lens = [], []
    for p, s, k, d in zip(params["convs"], strides, kernel_size, dilations):
        x, t = mdc_stage_forward(p, x, t, s, k, d)
        fmap_padded.append(x)
        lens.append(t)
    # final post conv: Conv1d(C -> 1, k=3, stride=1, padding=1), no activation
    pw = _aug_weight_cm(params["post"]["w"], params["post"]["b"])
    y_pad, ly = _fused_stage(x, t, [pw], [(3, 1)], None, None, branch_act=False)
    # trim the lane padding back to the true lengths (NCT semantics preserved)
    fmap = [f[:, :, :l] for f, l in zip(fmap_padded, lens)]
    y = y_pad[:, :, :ly]
    return y, fmap


# ---------------------------------------------------------------------------
if __name__ == "__main__":
    # small synthetic SBDBlock configuration
    segment_dim = 8
    filters = [16, 32]
    strides = [1, 2]
    kernel_size = [[3, 5], [3, 5]]
    dilations = [[1, 2], [1, 2]]

    key = jax.random.PRNGKey(0)
    pkey, xkey = jax.random.split(key)
    params = init_sbd_block(pkey, segment_dim, strides, filters,
                            kernel_size, dilations)

    B, T = 2, 32
    x = jax.random.normal(xkey, (B, segment_dim, T), jnp.float32)

    fwd = jax.jit(functools.partial(
        sbd_block_forward, strides=strides,
        kernel_size=kernel_size, dilations=dilations))

    y, fmap = fwd(params, x)
    jax.block_until_ready(y)
    for f in fmap:
        jax.block_until_ready(f)

    # expected shapes: y (2,1,22); fmap [(2,16,38), (2,32,22)]
    print("KERNEL_OK")
</pallas_src>

<mosaic_0001>
module attributes {stable_mosaic.version = 11 : i64} {
  func.func @_stage_kernel(%arg0: i32, %arg1: memref<1x8x32xf32, #tpu.memory_space<vmem>>, %arg2: memref<16x25xf32, #tpu.memory_space<vmem>>, %arg3: memref<16x41xf32, #tpu.memory_space<vmem>>, %arg4: memref<16x49xf32, #tpu.memory_space<vmem>>, %arg5: memref<1x16x128xf32, #tpu.memory_space<vmem>>) attributes {dimension_semantics = [#tpu.dimension_semantics<parallel>], iteration_bounds = array<i64: 2>, scalar_prefetch = 0 : i64, scratch_operands = 0 : i64, tpu.core_type = #tpu.core_type<tc>, window_params = [{transform_indices = @transform_0, window_bounds = array<i64: 1, 8, 32>}, {pipeline_mode = #tpu.pipeline_mode<synchronous>, transform_indices = @transform_1, window_bounds = array<i64: 16, 25>}, {pipeline_mode = #tpu.pipeline_mode<synchronous>, transform_indices = @transform_2, window_bounds = array<i64: 16, 41>}, {pipeline_mode = #tpu.pipeline_mode<synchronous>, transform_indices = @transform_3, window_bounds = array<i64: 16, 49>}, {transform_indices = @transform_4, window_bounds = array<i64: 1, 16, 128>}]} {
    %c0 = arith.constant 0 : index
    %c0_0 = arith.constant 0 : index
    %c0_1 = arith.constant 0 : index
    %0 = vector.load %arg1[%c0, %c0_0, %c0_1] : memref<1x8x32xf32, #tpu.memory_space<vmem>>, vector<1x8x32xf32>
    %1 = vector.shape_cast %0 : vector<1x8x32xf32> to vector<8x32xf32>
    %cst = arith.constant 0.000000e+00 : f32
    %2 = vector.broadcast %cst : f32 to vector<8x4xf32>
    %3 = tpu.concatenate %2, %1, %2 in 1 : vector<8x4xf32>, vector<8x32xf32>, vector<8x4xf32> -> vector<8x40xf32>
    %cst_2 = arith.constant 1.000000e+00 : f32
    %4 = vector.broadcast %cst_2 : f32 to vector<1x32xf32>
    %5 = vector.extract_strided_slice %3 {offsets = [0, 3], sizes = [8, 32], strides = [1, 1]} : vector<8x40xf32> to vector<8x32xf32>
    %6 = vector.extract_strided_slice %3 {offsets = [0, 4], sizes = [8, 32], strides = [1, 1]} : vector<8x40xf32> to vector<8x32xf32>
    %7 = vector.extract_strided_slice %3 {offsets = [0, 5], sizes = [8, 32], strides = [1, 1]} : vector<8x40xf32> to vector<8x32xf32>
    %8 = tpu.concatenate %5, %6, %7, %4 in 0 : vector<8x32xf32>, vector<8x32xf32>, vector<8x32xf32>, vector<1x32xf32> -> vector<25x32xf32>
    %c0_3 = arith.constant 0 : index
    %c0_4 = arith.constant 0 : index
    %9 = vector.load %arg2[%c0_3, %c0_4] : memref<16x25xf32, #tpu.memory_space<vmem>>, vector<16x25xf32>
    %cst_5 = arith.constant dense<0.000000e+00> : vector<16x32xf32>
    %10 = tpu.matmul %9, %8, %cst_5 {dimension_numbers = #tpu.dot_dimension_numbers<[1], [0], [0], [1], [0, 0, 1, 1], [], []>} : vector<16x25xf32>, vector<25x32xf32>, vector<16x32xf32> -> vector<16x32xf32>
    %cst_6 = arith.constant 0.000000e+00 : f32
    %11 = vector.broadcast %cst_6 : f32 to vector<16x32xf32>
    %12 = arith.cmpf oge, %10, %11 : vector<16x32xf32>
    %cst_7 = arith.constant 2.000000e-01 : f32
    %13 = vector.broadcast %cst_7 : f32 to vector<16x32xf32>
    %14 = arith.mulf %13, %10 : vector<16x32xf32>
    %15 = arith.select %12, %10, %14 : vector<16x32xi1>, vector<16x32xf32>
    %16 = vector.extract_strided_slice %3 {offsets = [0, 0], sizes = [8, 32], strides = [1, 1]} : vector<8x40xf32> to vector<8x32xf32>
    %17 = vector.extract_strided_slice %3 {offsets = [0, 2], sizes = [8, 32], strides = [1, 1]} : vector<8x40xf32> to vector<8x32xf32>
    %18 = vector.extract_strided_slice %3 {offsets = [0, 4], sizes = [8, 32], strides = [1, 1]} : vector<8x40xf32> to vector<8x32xf32>
    %19 = vector.extract_strided_slice %3 {offsets = [0, 6], sizes = [8, 32], strides = [1, 1]} : vector<8x40xf32> to vector<8x32xf32>
    %20 = vector.extract_strided_slice %3 {offsets = [0, 8], sizes = [8, 32], strides = [1, 1]} : vector<8x40xf32> to vector<8x32xf32>
    %21 = tpu.concatenate %16, %17, %18, %19, %20, %4 in 0 : vector<8x32xf32>, vector<8x32xf32>, vector<8x32xf32>, vector<8x32xf32>, vector<8x32xf32>, vector<1x32xf32> -> vector<41x32xf32>
    %c0_8 = arith.constant 0 : index
    %c0_9 = arith.constant 0 : index
    %22 = vector.load %arg3[%c0_8, %c0_9] : memref<16x41xf32, #tpu.memory_space<vmem>>, vector<16x41xf32>
    %cst_10 = arith.constant dense<0.000000e+00> : vector<16x32xf32>
    %23 = tpu.matmul %22, %21, %cst_10 {dimension_numbers = #tpu.dot_dimension_numbers<[1], [0], [0], [1], [0, 0, 1, 1], [], []>} : vector<16x41xf32>, vector<41x32xf32>, vector<16x32xf32> -> vector<16x32xf32>
    %cst_11 = arith.constant 0.000000e+00 : f32
    %24 = vector.broadcast %cst_11 : f32 to vector<16x32xf32>
    %25 = arith.cmpf oge, %23, %24 : vector<16x32xf32>
    %cst_12 = arith.constant 2.000000e-01 : f32
    %26 = vector.broadcast %cst_12 : f32 to vector<16x32xf32>
    %27 = arith.mulf %26, %23 : vector<16x32xf32>
    %28 = arith.select %25, %23, %27 : vector<16x32xi1>, vector<16x32xf32>
    %29 = arith.addf %15, %28 : vector<16x32xf32>
    %cst_13 = arith.constant 0.000000e+00 : f32
    %30 = vector.broadcast %cst_13 : f32 to vector<16x4xf32>
    %31 = tpu.concatenate %30, %29, %30 in 1 : vector<16x4xf32>, vector<16x32xf32>, vector<16x4xf32> -> vector<16x40xf32>
    %cst_14 = arith.constant 1.000000e+00 : f32
    %32 = vector.broadcast %cst_14 : f32 to vector<1x38xf32>
    %33 = vector.extract_strided_slice %31 {offsets = [0, 0], sizes = [16, 38], strides = [1, 1]} : vector<16x40xf32> to vector<16x38xf32>
    %34 = vector.extract_strided_slice %31 {offsets = [0, 1], sizes = [16, 38], strides = [1, 1]} : vector<16x40xf32> to vector<16x38xf32>
    %35 = vector.extract_strided_slice %31 {offsets = [0, 2], sizes = [16, 38], strides = [1, 1]} : vector<16x40xf32> to vector<16x38xf32>
    %36 = tpu.concatenate %33, %34, %35, %32 in 0 : vector<16x38xf32>, vector<16x38xf32>, vector<16x38xf32>, vector<1x38xf32> -> vector<49x38xf32>
    %c0_15 = arith.constant 0 : index
    %c0_16 = arith.constant 0 : index
    %37 = vector.load %arg4[%c0_15, %c0_16] : memref<16x49xf32, #tpu.memory_space<vmem>>, vector<16x49xf32>
    %cst_17 = arith.constant dense<0.000000e+00> : vector<16x38xf32>
    %38 = tpu.matmul %37, %36, %cst_17 {dimension_numbers = #tpu.dot_dimension_numbers<[1], [0], [0], [1], [0, 0, 1, 1], [], []>} : vector<16x49xf32>, vector<49x38xf32>, vector<16x38xf32> -> vector<16x38xf32>
    %cst_18 = arith.constant 0.000000e+00 : f32
    %39 = vector.broadcast %cst_18 : f32 to vector<16x38xf32>
    %40 = arith.cmpf oge, %38, %39 : vector<16x38xf32>
    %cst_19 = arith.constant 2.000000e-01 : f32
    %41 = vector.broadcast %cst_19 : f32 to vector<16x38xf32>
    %42 = arith.mulf %41, %38 : vector<16x38xf32>
    %43 = arith.select %40, %38, %42 : vector<16x38xi1>, vector<16x38xf32>
    %cst_20 = arith.constant 0.000000e+00 : f32
    %44 = vector.broadcast %cst_20 : f32 to vector<16x90xf32>
    %45 = tpu.concatenate %43, %44 in 1 : vector<16x38xf32>, vector<16x90xf32> -> vector<16x128xf32>
    %c0_21 = arith.constant 0 : index
    %c0_22 = arith.constant 0 : index
    %c0_23 = arith.constant 0 : index
    %46 = vector.load %arg5[%c0_21, %c0_22, %c0_23] : memref<1x16x128xf32, #tpu.memory_space<vmem>>, vector<1x16x128xf32>
    %47 = vector.shape_cast %46 : vector<1x16x128xf32> to vector<16x128xf32>
    %48 = vector.shape_cast %45 : vector<16x128xf32> to vector<1x16x128xf32>
    tpu.vector_store %arg5[%c0_21, %c0_22, %c0_23], %48 {strides = array<i32>} : memref<1x16x128xf32, #tpu.memory_space<vmem>>, vector<1x16x128xf32>,
    return
  }
  func.func @transform_0(%arg0: i32) -> (i32, i32, i32) {
    %c0_i32 = arith.constant 0 : i32
    %c0_i32_0 = arith.constant 0 : i32
    %c0_i32_1 = arith.constant 0 : i32
    return %arg0, %c0_i32, %c0_i32_0 : i32, i32, i32
  }
  func.func @transform_1(%arg0: i32) -> (i32, i32) {
    %c0_i32 = arith.constant 0 : i32
    %c0_i32_0 = arith.constant 0 : i32
    %c0_i32_1 = arith.constant 0 : i32
    return %c0_i32, %c0_i32_0 : i32, i32
  }
  func.func @transform_2(%arg0: i32) -> (i32, i32) {
    %c0_i32 = arith.constant 0 : i32
    %c0_i32_0 = arith.constant 0 : i32
    %c0_i32_1 = arith.constant 0 : i32
    return %c0_i32, %c0_i32_0 : i32, i32
  }
  func.func @transform_3(%arg0: i32) -> (i32, i32) {
    %c0_i32 = arith.constant 0 : i32
    %c0_i32_0 = arith.constant 0 : i32
    %c0_i32_1 = arith.constant 0 : i32
    return %c0_i32, %c0_i32_0 : i32, i32
  }
  func.func @transform_4(%arg0: i32) -> (i32, i32, i32) {
    %c0_i32 = arith.constant 0 : i32
    %c0_i32_0 = arith.constant 0 : i32
    %c0_i32_1 = arith.constant 0 : i32
    return %arg0, %c0_i32, %c0_i32_0 : i32, i32, i32
  }
}

module attributes {stable_mosaic.version = 11 : i64} {
  func.func @_stage_kernel(%arg0: i32, %arg1: memref<1x16x128xf32, #tpu.memory_space<vmem>>, %arg2: memref<32x49xf32, #tpu.memory_space<vmem>>, %arg3: memref<32x81xf32, #tpu.memory_space<vmem>>, %arg4: memref<32x97xf32, #tpu.memory_space<vmem>>, %arg5: memref<1x32x128xf32, #tpu.memory_space<vmem>>) attributes {dimension_semantics = [#tpu.dimension_semantics<parallel>], iteration_bounds = array<i64: 2>, scalar_prefetch = 0 : i64, scratch_operands = 0 : i64, tpu.core_type = #tpu.core_type<tc>, window_params = [{transform_indices = @transform_0, window_bounds = array<i64: 1, 16, 128>}, {pipeline_mode = #tpu.pipeline_mode<synchronous>, transform_indices = @transform_1, window_bounds = array<i64: 32, 49>}, {pipeline_mode = #tpu.pipeline_mode<synchronous>, transform_indices = @transform_2, window_bounds = array<i64: 32, 81>}, {pipeline_mode = #tpu.pipeline_mode<synchronous>, transform_indices = @transform_3, window_bounds = array<i64: 32, 97>}, {transform_indices = @transform_4, window_bounds = array<i64: 1, 32, 128>}]} {
    %c0 = arith.constant 0 : index
    %c0_0 = arith.constant 0 : index
    %c0_1 = arith.constant 0 : index
    %0 = vector.load %arg1[%c0, %c0_0, %c0_1] : memref<1x16x128xf32, #tpu.memory_space<vmem>>, vector<1x16x38xf32>
    %1 = vector.shape_cast %0 : vector<1x16x38xf32> to vector<16x38xf32>
    %cst = arith.constant 0.000000e+00 : f32
    %2 = vector.broadcast %cst : f32 to vector<16x4xf32>
    %3 = tpu.concatenate %2, %1, %2 in 1 : vector<16x4xf32>, vector<16x38xf32>, vector<16x4xf32> -> vector<16x46xf32>
    %cst_2 = arith.constant 1.000000e+00 : f32
    %4 = vector.broadcast %cst_2 : f32 to vector<1x38xf32>
    %5 = vector.extract_strided_slice %3 {offsets = [0, 3], sizes = [16, 38], strides = [1, 1]} : vector<16x46xf32> to vector<16x38xf32>
    %6 = vector.extract_strided_slice %3 {offsets = [0, 4], sizes = [16, 38], strides = [1, 1]} : vector<16x46xf32> to vector<16x38xf32>
    %7 = vector.extract_strided_slice %3 {offsets = [0, 5], sizes = [16, 38], strides = [1, 1]} : vector<16x46xf32> to vector<16x38xf32>
    %8 = tpu.concatenate %5, %6, %7, %4 in 0 : vector<16x38xf32>, vector<16x38xf32>, vector<16x38xf32>, vector<1x38xf32> -> vector<49x38xf32>
    %c0_3 = arith.constant 0 : index
    %c0_4 = arith.constant 0 : index
    %9 = vector.load %arg2[%c0_3, %c0_4] : memref<32x49xf32, #tpu.memory_space<vmem>>, vector<32x49xf32>
    %cst_5 = arith.constant dense<0.000000e+00> : vector<32x38xf32>
    %10 = tpu.matmul %9, %8, %cst_5 {dimension_numbers = #tpu.dot_dimension_numbers<[1], [0], [0], [1], [0, 0, 1, 1], [], []>} : vector<32x49xf32>, vector<49x38xf32>, vector<32x38xf32> -> vector<32x38xf32>
    %cst_6 = arith.constant 0.000000e+00 : f32
    %11 = vector.broadcast %cst_6 : f32 to vector<32x38xf32>
    %12 = arith.cmpf oge, %10, %11 : vector<32x38xf32>
    %cst_7 = arith.constant 2.000000e-01 : f32
    %13 = vector.broadcast %cst_7 : f32 to vector<32x38xf32>
    %14 = arith.mulf %13, %10 : vector<32x38xf32>
    %15 = arith.select %12, %10, %14 : vector<32x38xi1>, vector<32x38xf32>
    %16 = vector.extract_strided_slice %3 {offsets = [0, 0], sizes = [16, 38], strides = [1, 1]} : vector<16x46xf32> to vector<16x38xf32>
    %17 = vector.extract_strided_slice %3 {offsets = [0, 2], sizes = [16, 38], strides = [1, 1]} : vector<16x46xf32> to vector<16x38xf32>
    %18 = vector.extract_strided_slice %3 {offsets = [0, 4], sizes = [16, 38], strides = [1, 1]} : vector<16x46xf32> to vector<16x38xf32>
    %19 = vector.extract_strided_slice %3 {offsets = [0, 6], sizes = [16, 38], strides = [1, 1]} : vector<16x46xf32> to vector<16x38xf32>
    %20 = vector.extract_strided_slice %3 {offsets = [0, 8], sizes = [16, 38], strides = [1, 1]} : vector<16x46xf32> to vector<16x38xf32>
    %21 = tpu.concatenate %16, %17, %18, %19, %20, %4 in 0 : vector<16x38xf32>, vector<16x38xf32>, vector<16x38xf32>, vector<16x38xf32>, vector<16x38xf32>, vector<1x38xf32> -> vector<81x38xf32>
    %c0_8 = arith.constant 0 : index
    %c0_9 = arith.constant 0 : index
    %22 = vector.load %arg3[%c0_8, %c0_9] : memref<32x81xf32, #tpu.memory_space<vmem>>, vector<32x81xf32>
    %cst_10 = arith.constant dense<0.000000e+00> : vector<32x38xf32>
    %23 = tpu.matmul %22, %21, %cst_10 {dimension_numbers = #tpu.dot_dimension_numbers<[1], [0], [0], [1], [0, 0, 1, 1], [], []>} : vector<32x81xf32>, vector<81x38xf32>, vector<32x38xf32> -> vector<32x38xf32>
    %cst_11 = arith.constant 0.000000e+00 : f32
    %24 = vector.broadcast %cst_11 : f32 to vector<32x38xf32>
    %25 = arith.cmpf oge, %23, %24 : vector<32x38xf32>
    %cst_12 = arith.constant 2.000000e-01 : f32
    %26 = vector.broadcast %cst_12 : f32 to vector<32x38xf32>
    %27 = arith.mulf %26, %23 : vector<32x38xf32>
    %28 = arith.select %25, %23, %27 : vector<32x38xi1>, vector<32x38xf32>
    %29 = arith.addf %15, %28 : vector<32x38xf32>
    %cst_13 = arith.constant 0.000000e+00 : f32
    %30 = vector.broadcast %cst_13 : f32 to vector<32x4xf32>
    %31 = tpu.concatenate %30, %29, %30 in 1 : vector<32x4xf32>, vector<32x38xf32>, vector<32x4xf32> -> vector<32x46xf32>
    %cst_14 = arith.constant 1.000000e+00 : f32
    %32 = vector.broadcast %cst_14 : f32 to vector<1x44xf32>
    %33 = vector.extract_strided_slice %31 {offsets = [0, 0], sizes = [32, 44], strides = [1, 1]} : vector<32x46xf32> to vector<32x44xf32>
    %34 = vector.extract_strided_slice %31 {offsets = [0, 1], sizes = [32, 44], strides = [1, 1]} : vector<32x46xf32> to vector<32x44xf32>
    %35 = vector.extract_strided_slice %31 {offsets = [0, 2], sizes = [32, 44], strides = [1, 1]} : vector<32x46xf32> to vector<32x44xf32>
    %36 = tpu.concatenate %33, %34, %35, %32 in 0 : vector<32x44xf32>, vector<32x44xf32>, vector<32x44xf32>, vector<1x44xf32> -> vector<97x44xf32>
    %c0_15 = arith.constant 0 : index
    %c0_16 = arith.constant 0 : index
    %37 = vector.load %arg4[%c0_15, %c0_16] : memref<32x97xf32, #tpu.memory_space<vmem>>, vector<32x97xf32>
    %cst_17 = arith.constant dense<0.000000e+00> : vector<32x44xf32>
    %38 = tpu.matmul %37, %36, %cst_17 {dimension_numbers = #tpu.dot_dimension_numbers<[1], [0], [0], [1], [0, 0, 1, 1], [], []>} : vector<32x97xf32>, vector<97x44xf32>, vector<32x44xf32> -> vector<32x44xf32>
    %39 = tpu.iota {dimensions = array<i32: 0>} : vector<44x22xi32>
    %40 = tpu.iota {dimensions = array<i32: 1>} : vector<44x22xi32>
    %c2_i32 = arith.constant 2 : i32
    %41 = vector.broadcast %c2_i32 : i32 to vector<44x22xi32>
    %42 = arith.muli %40, %41 : vector<44x22xi32>
    %43 = arith.cmpi eq, %39, %42 : vector<44x22xi32>
    %44 = arith.extui %43 : vector<44x22xi1> to vector<44x22xi32>
    %45 = arith.sitofp %44 : vector<44x22xi32> to vector<44x22xf32>
    %cst_18 = arith.constant dense<0.000000e+00> : vector<32x22xf32>
    %46 = tpu.matmul %38, %45, %cst_18 {dimension_numbers = #tpu.dot_dimension_numbers<[1], [0], [0], [1], [0, 0, 1, 1], [], []>} : vector<32x44xf32>, vector<44x22xf32>, vector<32x22xf32> -> vector<32x22xf32>
    %cst_19 = arith.constant 0.000000e+00 : f32
    %47 = vector.broadcast %cst_19 : f32 to vector<32x22xf32>
    %48 = arith.cmpf oge, %46, %47 : vector<32x22xf32>
    %cst_20 = arith.constant 2.000000e-01 : f32
    %49 = vector.broadcast %cst_20 : f32 to vector<32x22xf32>
    %50 = arith.mulf %49, %46 : vector<32x22xf32>
    %51 = arith.select %48, %46, %50 : vector<32x22xi1>, vector<32x22xf32>
    %cst_21 = arith.constant 0.000000e+00 : f32
    %52 = vector.broadcast %cst_21 : f32 to vector<32x106xf32>
    %53 = tpu.concatenate %51, %52 in 1 : vector<32x22xf32>, vector<32x106xf32> -> vector<32x128xf32>
    %c0_22 = arith.constant 0 : index
    %c0_23 = arith.constant 0 : index
    %c0_24 = arith.constant 0 : index
    %54 = vector.load %arg5[%c0_22, %c0_23, %c0_24] : memref<1x32x128xf32, #tpu.memory_space<vmem>>, vector<1x32x128xf32>
    %55 = vector.shape_cast %54 : vector<1x32x128xf32> to vector<32x128xf32>
    %56 = vector.shape_cast %53 : vector<32x128xf32> to vector<1x32x128xf32>
    tpu.vector_store %arg5[%c0_22, %c0_23, %c0_24], %56 {strides = array<i32>} : memref<1x32x128xf32, #tpu.memory_space<vmem>>, vector<1x32x128xf32>,
    return
  }
  func.func @transform_0(%arg0: i32) -> (i32, i32, i32) {
    %c0_i32 = arith.constant 0 : i32
    %c0_i32_0 = arith.constant 0 : i32
    %c0_i32_1 = arith.constant 0 : i32
    return %arg0, %c0_i32, %c0_i32_0 : i32, i32, i32
  }
  func.func @transform_1(%arg0: i32) -> (i32, i32) {
    %c0_i32 = arith.constant 0 : i32
    %c0_i32_0 = arith.constant 0 : i32
    %c0_i32_1 = arith.constant 0 : i32
    return %c0_i32, %c0_i32_0 : i32, i32
  }
  func.func @transform_2(%arg0: i32) -> (i32, i32) {
    %c0_i32 = arith.constant 0 : i32
    %c0_i32_0 = arith.constant 0 : i32
    %c0_i32_1 = arith.constant 0 : i32
    return %c0_i32, %c0_i32_0 : i32, i32
  }
  func.func @transform_3(%arg0: i32) -> (i32, i32) {
    %c0_i32 = arith.constant 0 : i32
    %c0_i32_0 = arith.constant 0 : i32
    %c0_i32_1 = arith.constant 0 : i32
    return %c0_i32, %c0_i32_0 : i32, i32
  }
  func.func @transform_4(%arg0: i32) -> (i32, i32, i32) {
    %c0_i32 = arith.constant 0 : i32
    %c0_i32_0 = arith.constant 0 : i32
    %c0_i32_1 = arith.constant 0 : i32
    return %arg0, %c0_i32, %c0_i32_0 : i32, i32, i32
  }
}

module attributes {stable_mosaic.version = 11 : i64} {
  func.func @_stage_kernel(%arg0: i32, %arg1: memref<1x32x128xf32, #tpu.memory_space<vmem>>, %arg2: memref<1x97xf32, #tpu.memory_space<vmem>>, %arg3: memref<1x1x128xf32, #tpu.memory_space<vmem>>) attributes {dimension_semantics = [#tpu.dimension_semantics<parallel>], iteration_bounds = array<i64: 2>, scalar_prefetch = 0 : i64, scratch_operands = 0 : i64, tpu.core_type = #tpu.core_type<tc>, window_params = [{transform_indices = @transform_0, window_bounds = array<i64: 1, 32, 128>}, {pipeline_mode = #tpu.pipeline_mode<synchronous>, transform_indices = @transform_1, window_bounds = array<i64: 1, 97>}, {transform_indices = @transform_2, window_bounds = array<i64: 1, 1, 128>}]} {
    %c0 = arith.constant 0 : index
    %c0_0 = arith.constant 0 : index
    %c0_1 = arith.constant 0 : index
    %0 = vector.load %arg1[%c0, %c0_0, %c0_1] : memref<1x32x128xf32, #tpu.memory_space<vmem>>, vector<1x32x22xf32>
    %1 = vector.shape_cast %0 : vector<1x32x22xf32> to vector<32x22xf32>
    %cst = arith.constant 0.000000e+00 : f32
    %2 = vector.broadcast %cst : f32 to vector<32x1xf32>
    %3 = tpu.concatenate %2, %1, %2 in 1 : vector<32x1xf32>, vector<32x22xf32>, vector<32x1xf32> -> vector<32x24xf32>
    %cst_2 = arith.constant 1.000000e+00 : f32
    %4 = vector.broadcast %cst_2 : f32 to vector<1x22xf32>
    %5 = vector.extract_strided_slice %3 {offsets = [0, 0], sizes = [32, 22], strides = [1, 1]} : vector<32x24xf32> to vector<32x22xf32>
    %6 = vector.extract_strided_slice %3 {offsets = [0, 1], sizes = [32, 22], strides = [1, 1]} : vector<32x24xf32> to vector<32x22xf32>
    %7 = vector.extract_strided_slice %3 {offsets = [0, 2], sizes = [32, 22], strides = [1, 1]} : vector<32x24xf32> to vector<32x22xf32>
    %8 = tpu.concatenate %5, %6, %7, %4 in 0 : vector<32x22xf32>, vector<32x22xf32>, vector<32x22xf32>, vector<1x22xf32> -> vector<97x22xf32>
    %c0_3 = arith.constant 0 : index
    %c0_4 = arith.constant 0 : index
    %9 = vector.load %arg2[%c0_3, %c0_4] : memref<1x97xf32, #tpu.memory_space<vmem>>, vector<1x97xf32>
    %cst_5 = arith.constant dense<0.000000e+00> : vector<1x22xf32>
    %10 = tpu.matmul %9, %8, %cst_5 {dimension_numbers = #tpu.dot_dimension_numbers<[1], [0], [0], [1], [0, 0, 1, 1], [], []>} : vector<1x97xf32>, vector<97x22xf32>, vector<1x22xf32> -> vector<1x22xf32>
    %cst_6 = arith.constant 0.000000e+00 : f32
    %11 = vector.broadcast %cst_6 : f32 to vector<1x106xf32>
    %12 = tpu.concatenate %10, %11 in 1 : vector<1x22xf32>, vector<1x106xf32> -> vector<1x128xf32>
    %c0_7 = arith.constant 0 : index
    %c0_8 = arith.constant 0 : index
    %c0_9 = arith.constant 0 : index
    %13 = vector.load %arg3[%c0_7, %c0_8, %c0_9] : memref<1x1x128xf32, #tpu.memory_space<vmem>>, vector<1x1x128xf32>
    %14 = vector.shape_cast %13 : vector<1x1x128xf32> to vector<1x128xf32>
    %15 = vector.shape_cast %12 : vector<1x128xf32> to vector<1x1x128xf32>
    tpu.vector_store %arg3[%c0_7, %c0_8, %c0_9], %15 {strides = array<i32>} : memref<1x1x128xf32, #tpu.memory_space<vmem>>, vector<1x1x128xf32>,
    return
  }
  func.func @transform_0(%arg0: i32) -> (i32, i32, i32) {
    %c0_i32 = arith.constant 0 : i32
    %c0_i32_0 = arith.constant 0 : i32
    %c0_i32_1 = arith.constant 0 : i32
    return %arg0, %c0_i32, %c0_i32_0 : i32, i32, i32
  }
  func.func @transform_1(%arg0: i32) -> (i32, i32) {
    %c0_i32 = arith.constant 0 : i32
    %c0_i32_0 = arith.constant 0 : i32
    %c0_i32_1 = arith.constant 0 : i32
    return %c0_i32, %c0_i32_0 : i32, i32
  }
  func.func @transform_2(%arg0: i32) -> (i32, i32, i32) {
    %c0_i32 = arith.constant 0 : i32
    %c0_i32_0 = arith.constant 0 : i32
    %c0_i32_1 = arith.constant 0 : i32
    return %arg0, %c0_i32, %c0_i32_0 : i32, i32, i32
  }
}

</mosaic_0001>

<llo_original>
// kernel: sbd_block_forward.5
$region0: #{sbd_block_forward.5}
  #allocation0 [shape = 'u32[]', space=smem, size = 0x4, offset = 0x4, fixed_abs, tag = 'smem constant byte address 0x4 - core index']
  #allocation1 [shape = 'u32[144,128]{1,0:T(1,128)}', space=vmem, size = 0x12000, scoped, tag = 'internal scratch']
  %s0 = inlined_call_operand.vmem [shape: f32[2,32,128], index: 0, kind: input, shape index: {}]
  %s1 = inlined_call_operand.vmem [shape: f32[1,97], index: 1, kind: input, shape index: {}]
  %s2 = inlined_call_operand.hbm [shape: f32[2,1,128], index: 2, kind: output, shape index: {}]
  %s3 = sld [smem:[#allocation0]]
  $region41: #{sbd_block_forward.5} parent=0
    _
  %s5 = ssub.s32 1, %s3
  %s6 = scalar_select 0, %s5, %s3
  $region1: #{sbd_block_forward.5} parent=0
    #allocation2 [shape = 'u8[1024]{0}', space=vmem, size = 0x400, scoped, tag = 'output window, operand 0']
    #allocation3 [shape = 's32[2]{0}', space=sflag, size = 0x8, scoped, tag = 'scoped memory for sbd_block_forward.5']
    %7 = vsyncpa [#allocation3], 0
    %s8 = scalar_lea.sflag [#allocation3], 1
    %9 = vsyncpa %s8, 0
    loop: start=0, step=1, limit=4
    $region2: #{sbd_block_forward.5} parent=1 // loop_pre_header
      _
    $region3: #{sbd_block_forward.5} parent=1 // loop_header
      %s11 = sphi 0, %s15
      %p12 = scmp.ge.s32.totalorder %s11, 4
      %s21 = sphi 0, %s23
      %s24 = sphi 0, %s21
      %s25 = sphi 0, %s24
      %s41 = sphi 0, %s25
      %s45 = sphi 0, %s45
      %s47 = sphi 0, %s45
      %s48 = sphi 0, %s47
      %s62 = sphi 0, %s48
      %s68 = sphi 0, %s70
      %s71 = sphi 0, %s68
      %s72 = sphi 0, %s71
      %s88 = sphi 0, %s72
    $region4: #{sbd_block_forward.5} parent=1 // loop_header_branch
      %14 = sbr.rel (%p12) target = $region8
    $region5: #{sbd_block_forward.5} parent=1 // loop_body
      %s16 = ssub.s32 %s11, 1
      %s17 = ssub.s32 %s11, 2
      %s18 = sadd.s32 %s11, 1
      %s19 = ssub.s32 %s11, %s18
      %p20 = scmp.eq.s32.totalorder %s19, 0
      %s22 = sadd.s32 %s21, 1
      %s23 = scalar_select %p20, %s21, %s22
      %p26 = pneg %p20
      %p27 = scmp.eq.s32.totalorder %s11, 1
      %p28 = por %p26, %p27
      %p29 = scmp.ne.s32.totalorder %s21, %s24
      %p30 = scmp.eq.s32.totalorder %s11, 0
      %p31 = por %p29, %p30
      %p32 = scmp.ne.s32.totalorder %s21, %s24
      %p33 = scmp.eq.s32.totalorder %s16, 1
      %p34 = por %p32, %p33
      %p35 = scmp.ne.s32.totalorder %s24, %s25
      %p36 = scmp.eq.s32.totalorder %s16, 0
      %p37 = por %p35, %p36
      %p38 = scmp.ne.s32.totalorder %s24, %s25
      %p39 = scmp.eq.s32.totalorder %s17, 1
      %p40 = por %p38, %p39
      %p42 = scmp.ne.s32.totalorder %s25, %s41
      %p43 = scmp.eq.s32.totalorder %s17, 0
      %p44 = por %p42, %p43
      %s46 = sadd.s32 %s45, 1
      %p49 = scmp.eq.s32.totalorder %s11, 1
      %p50 = scmp.ne.s32.totalorder %s45, %s47
      %p51 = scmp.eq.s32.totalorder %s11, 0
      %p52 = por %p50, %p51
      %p53 = scmp.ne.s32.totalorder %s45, %s47
      %p54 = scmp.eq.s32.totalorder %s16, 1
      %p55 = por %p53, %p54
      %p56 = scmp.ne.s32.totalorder %s47, %s48
      %p57 = scmp.eq.s32.totalorder %s16, 0
      %p58 = por %p56, %p57
      %p59 = scmp.ne.s32.totalorder %s47, %s48
      %p60 = scmp.eq.s32.totalorder %s17, 1
      %p61 = por %p59, %p60
      %p63 = scmp.ne.s32.totalorder %s48, %s62
      %p64 = scmp.eq.s32.totalorder %s17, 0
      %p65 = por %p63, %p64
      %s66 = ssub.s32 %s11, %s18
      %p67 = scmp.eq.s32.totalorder %s66, 0
      %s69 = sadd.s32 %s68, 1
      %s70 = scalar_select %p67, %s68, %s69
      %p73 = pneg %p67
      %p74 = scmp.eq.s32.totalorder %s11, 1
      %p75 = por %p73, %p74
      %p76 = scmp.ne.s32.totalorder %s68, %s71
      %p77 = scmp.eq.s32.totalorder %s11, 0
      %p78 = por %p76, %p77
      %p79 = scmp.ne.s32.totalorder %s68, %s71
      %p80 = scmp.eq.s32.totalorder %s16, 1
      %p81 = por %p79, %p80
      %p82 = scmp.ne.s32.totalorder %s71, %s72
      %p83 = scmp.eq.s32.totalorder %s16, 0
      %p84 = por %p82, %p83
      %p85 = scmp.ne.s32.totalorder %s71, %s72
      %p86 = scmp.eq.s32.totalorder %s17, 1
      %p87 = por %p85, %p86
      %p89 = scmp.ne.s32.totalorder %s72, %s88
      %p90 = scmp.eq.s32.totalorder %s17, 0
      %p91 = por %p89, %p90
      %p92 = scmp.le.s32.totalorder 1, %s11
      %p93 = scmp.lt.s32.totalorder %s11, 3
      %p94 = pnand %p92, %p93
      %p95 = pneg %p94
      // Predicated region
      $region9: #{sbd_block_forward.5} parent=5 // pred_check
        _
      $region10: #{sbd_block_forward.5} parent=5 // pred_check_branch
        %97 = sbr.rel (%p94) target = $region12
      $region11: #{sbd_block_forward.5} parent=5 // pred_region
        %s98 = ssub.s32 %s11, 1
        // Predicated region
        $region13: #{sbd_block_forward.5} parent=11 // pred_check
          %p99 = pneg %p58
        $region14: #{sbd_block_forward.5} parent=11 // pred_check_branch
          %101 = sbr.rel (%p99) target = $region16
        $region15: #{sbd_block_forward.5} parent=11 // pred_region
          _
        $region16: #{sbd_block_forward.5} parent=11 // pred_fallthru
          _
      $region12: #{sbd_block_forward.5} parent=5 // pred_fallthru
        _
      %p102 = scmp.lt.s32.totalorder %s11, 2
      // Predicated region
      $region17: #{sbd_block_forward.5} parent=5 // pred_check
        %p103 = pneg %p102
      $region18: #{sbd_block_forward.5} parent=5 // pred_check_branch
        %105 = sbr.rel (%p103) target = $region20
      $region19: #{sbd_block_forward.5} parent=5 // pred_region
        // Predicated region
        $region21: #{sbd_block_forward.5} parent=19 // pred_check
          %p106 = pneg %p31
        $region22: #{sbd_block_forward.5} parent=19 // pred_check_branch
          %108 = sbr.rel (%p106) target = $region24
        $region23: #{sbd_block_forward.5} parent=19 // pred_region
          %p109 = scmp.lt.s32.totalorder %s11, 1
          %s110 = scalar_select %p109, %s11, 1
          %s111 = smul.addr %s110, 4
          %s112 = smul.addr %s111, 8
          %s113 = scalar_lea.vmem %s0, %s112
        $region24: #{sbd_block_forward.5} parent=19 // pred_fallthru
          _
      $region20: #{sbd_block_forward.5} parent=5 // pred_fallthru
        _
      %p114 = scmp.le.s32.totalorder 1, %s11
      %p115 = scmp.lt.s32.totalorder %s11, 3
      %p116 = pnand %p114, %p115
      %p117 = pneg %p116
      // Predicated region
      $region25: #{sbd_block_forward.5} parent=5 // pred_check
        _
      $region26: #{sbd_block_forward.5} parent=5 // pred_check_branch
        %119 = sbr.rel (%p116) target = $region28
      $region27: #{sbd_block_forward.5} parent=5 // pred_region
        %s120 = ssub.s32 %s11, 1
        %p121 = scmp.lt.s32.totalorder %s16, 1
        %s122 = scalar_select %p121, %s16, 1
        %s123 = smul.addr %s122, 4
        %s124 = smul.addr %s123, 8
        %s125 = scalar_lea.vmem %s0, %s124
        %p126 = pneg %p37
        %p127 = pneg %p34
        %p128 = pneg %p58
        %p129 = pneg %p55
        %p130 = pneg %p84
        %p131 = pneg %p81
        %s132 = sand.u32 %s71, 1
        %s133 = scalar_lea.sflag [#allocation3], %s132
        %s134 = sand.u32 %s71, 1
        %s135 = scalar_lea.vmem [#allocation2], %s134
        %p136 = scmp.lt.s32.totalorder %s16, 1
        %s137 = scalar_select %p136, %s16, 1
        %s138 = smul.addr %s137, 4
        %s139 = smul.addr %s138, 8
        %s140 = scalar_lea.vmem %s0, %s139
        %v141 = vld [vmem:[%s140] sm:$0xff]
        %v142 = vld [vmem:[%s140 + $0x8] sm:$0xff]
        %v143 = vld [vmem:[%s140 + $0x10] sm:$0xff]
        %v144 = vld [vmem:[%s140 + $0x18] sm:$0xff]
        %149 = vrot.lane.b32.xlu0 %v141, 1
        %v150 = vpop.permute.xlu0 %149
        %151 = vrot.lane.b32.xlu0 %v142, 1
        %v152 = vpop.permute.xlu0 %151
        %153 = vrot.lane.b32.xlu0 %v143, 1
        %v154 = vpop.permute.xlu0 %153
        %155 = vrot.lane.b32.xlu0 %v144, 1
        %v156 = vpop.permute.xlu0 %155
        %vm161 = vcmask 7168
        %v162 = vsel %vm161, 0.0, %v150
        %v163 = vsel %vm161, 0.0, %v152
        %v164 = vsel %vm161, 0.0, %v154
        %v165 = vsel %vm161, 0.0, %v156
        %vm166 = vcmask 187392
        %v167 = vsel %vm166, %v162, 0.0
        %v168 = vsel %vm166, %v163, 0.0
        %v169 = vsel %vm166, %v164, 0.0
        %v170 = vsel %vm166, %v165, 0.0
        %175 = vrot.lane.b32.xlu0 %v167, 127
        %v176 = vpop.permute.xlu0 %175
        %177 = vrot.lane.b32.xlu0 %v168, 127
        %v178 = vpop.permute.xlu0 %177
        %179 = vrot.lane.b32.xlu0 %v169, 127
        %v180 = vpop.permute.xlu0 %179
        %181 = vrot.lane.b32.xlu0 %v170, 127
        %v182 = vpop.permute.xlu0 %181
        %187 = vrot.lane.b32.xlu0 %v167, 126
        %v188 = vpop.permute.xlu0 %187
        %189 = vrot.lane.b32.xlu0 %v168, 126
        %v190 = vpop.permute.xlu0 %189
        %191 = vrot.lane.b32.xlu0 %v169, 126
        %v192 = vpop.permute.xlu0 %191
        %193 = vrot.lane.b32.xlu0 %v170, 126
        %v194 = vpop.permute.xlu0 %193
        %v199 = vld [vmem:[%s1] sm:$0x1]
        %vm200 = vcmask 793600
        %v202 = vsel %vm200, %v199, 0
        %vm204 = vcmask 1040384
        %v206 = vsel %vm204, 1.0, 0
        %208 = vmatprep.subr.mxu0 0.0
        %209 = vmatpush1.msra.mxu0 0.0
        %210 = vmatprep.subr.mxu0 0.0
        %211 = vmatpush1.msra.mxu0 0.0
        %212 = vmatprep.subr.mxu0 0.0
        %213 = vmatpush1.msra.mxu0 0.0
        %214 = vmatprep.subr.mxu0 0.0
        %215 = vmatpush1.msra.mxu0 %v206
        %216 = vmatprep.subr.mxu0 0.0
        %217 = vmatpush1.msra.mxu0 %v194
        %218 = vmatprep.subr.mxu0 0.0
        %219 = vmatpush1.msra.mxu0 %v192
        %220 = vmatprep.subr.mxu0 0.0
        %221 = vmatpush1.msra.mxu0 %v190
        %222 = vmatprep.subr.mxu0 0.0
        %223 = vmatpush1.msra.mxu0 %v188
        %224 = vmatprep.subr.mxu0 0.0
        %225 = vmatpush1.msra.mxu0 %v182
        %226 = vmatprep.subr.mxu0 0.0
        %227 = vmatpush1.msra.mxu0 %v180
        %228 = vmatprep.subr.mxu0 0.0
        %229 = vmatpush1.msra.mxu0 %v178
        %230 = vmatprep.subr.mxu0 0.0
        %231 = vmatpush1.msra.mxu0 %v176
        %232 = vmatprep.subr.mxu0 0.0
        %233 = vmatpush1.msra.mxu0 %v170
        %234 = vmatprep.subr.mxu0 0.0
        %235 = vmatpush1.msra.mxu0 %v169
        %236 = vmatprep.subr.mxu0 0.0
        %237 = vmatpush1.msra.mxu0 %v168
        %238 = vmatprep.subr.mxu0 0.0
        %239 = vmatpush1.msra.mxu0 %v167
        %240 = vmatprep.subr.mxu0 0.0
        %241 = vmatpush2.msra.mxu0 0.0
        %242 = vmatprep.subr.mxu0 0.0
        %243 = vmatpush2.msra.mxu0 0.0
        %244 = vmatprep.subr.mxu0 0.0
        %245 = vmatpush2.msra.mxu0 0.0
        %246 = vmatprep.subr.mxu0 0.0
        %247 = vmatpush2.msra.mxu0 0.0
        %248 = vmatprep.subr.mxu0 0.0
        %249 = vmatpush2.msra.mxu0 0.0
        %250 = vmatprep.subr.mxu0 0.0
        %251 = vmatpush2.msra.mxu0 0.0
        %252 = vmatprep.subr.mxu0 0.0
        %253 = vmatpush2.msra.mxu0 0.0
        %254 = vmatprep.subr.mxu0 0.0
        %255 = vmatpush2.msra.mxu0 0.0
        %256 = vmatprep.subr.mxu0 0.0
        %257 = vmatpush2.msra.mxu0 0.0
        %258 = vmatprep.subr.mxu0 0.0
        %259 = vmatpush2.msra.mxu0 0.0
        %260 = vmatprep.subr.mxu0 0.0
        %261 = vmatpush2.msra.mxu0 0.0
        %262 = vmatprep.subr.mxu0 0.0
        %263 = vmatpush2.msra.mxu0 0.0
        %264 = vmatprep.subr.mxu0 0.0
        %265 = vmatpush2.msra.mxu0 0.0
        %266 = vmatprep.subr.mxu0 0.0
        %267 = vmatpush2.msra.mxu0 0.0
        %268 = vmatprep.subr.mxu0 0.0
        %269 = vmatpush2.msra.mxu0 0.0
        %270 = vmatprep.subr.mxu0 0.0
        %271 = vmatpush2.msra.mxu0 0.0
        %272 = vmatprep.mubr.f32.mxu0 0.0
        %273 = vmatmul.mubr.f32.gmra.mxu0 %v202
        %v274 = vpop.f32.mrf.mxu0
        %v275 = vadd.f32 0.0, %v274
        %v276 = vpop.f32.mrf.mxu0
        %277 = vdwg.mxu0
        %vm278 = vcmask 179200
        %v279 = vsel %vm278, %v275, 0.0
        %280 = vst [vmem:[%s135] sm:$0x1] %v279
        %s281 = sand.u32 %s71, 1
        %s282 = scalar_lea.sflag [#allocation3], %s281
        %s283 = sand.u32 %s71, 1
        %s284 = scalar_lea.vmem [#allocation2], %s283
        // Predicated region
        $region29: #{sbd_block_forward.5} parent=27 // pred_check
          %p285 = pneg %p81
        $region30: #{sbd_block_forward.5} parent=27 // pred_check_branch
          %287 = sbr.rel (%p285) target = $region32
        $region31: #{sbd_block_forward.5} parent=27 // pred_region
          %s289 = ssub.s32 16, 16
          %290 = vsyncadd %s282, %s289
          %s291 = smul.addr %s16, 16
          %s292 = scalar_lea.hbm %s2, %s291
          %s294 = sshll.u32 %s284, 4
          %s295 = int_to_ptr.vmem [resolvable:$true] %s294
          %297 = dma.vmem_to_hbm [thread:$0]  %s295, 16, %s292, %s282
        $region32: #{sbd_block_forward.5} parent=27 // pred_fallthru
          _
      $region28: #{sbd_block_forward.5} parent=5 // pred_fallthru
        _
      %p298 = scmp.le.s32.totalorder 2, %s11
      // Predicated region
      $region33: #{sbd_block_forward.5} parent=5 // pred_check
        %p299 = pneg %p298
      $region34: #{sbd_block_forward.5} parent=5 // pred_check_branch
        %301 = sbr.rel (%p299) target = $region36
      $region35: #{sbd_block_forward.5} parent=5 // pred_region
        %s302 = ssub.s32 %s11, 2
        // Predicated region
        $region37: #{sbd_block_forward.5} parent=35 // pred_check
          %p303 = pneg %p87
        $region38: #{sbd_block_forward.5} parent=35 // pred_check_branch
          %305 = sbr.rel (%p303) target = $region40
        $region39: #{sbd_block_forward.5} parent=35 // pred_region
          %s306 = sand.u32 %s72, 1
          %s307 = scalar_lea.sflag [#allocation3], %s306
          %s308 = sand.u32 %s72, 1
          %s309 = scalar_lea.vmem [#allocation2], %s308
          %310 = dma.done %s307, 16
        $region40: #{sbd_block_forward.5} parent=35 // pred_fallthru
          _
      $region36: #{sbd_block_forward.5} parent=5 // pred_fallthru
        _
    $region6: #{sbd_block_forward.5} parent=1 // loop_footer
      %s15 = sadd.s32 1, %s11
    $region7: #{sbd_block_forward.5} parent=1 // loop_footer_branch
      %10 = sbr.rel target = $region3
    $region8: #{sbd_block_forward.5} parent=1 // loop_exit
      _
    %311 = vsyncpa [#allocation3], 1
    %s312 = scalar_lea.sflag [#allocation3], 1
    %313 = vsyncpa %s312, 1

// kernel: sbd_block_forward.3
$region0: #{sbd_block_forward.3}
  #allocation0 [shape = 'u32[]', space=smem, size = 0x4, offset = 0x4, fixed_abs, tag = 'smem constant byte address 0x4 - core index']
  #allocation1 [shape = 'u32[144,128]{1,0:T(1,128)}', space=vmem, size = 0x12000, scoped, tag = 'internal scratch']
  %s0 = inlined_call_operand.vmem [shape: f32[2,8,32], index: 0, kind: input, shape index: {}]
  %s1 = inlined_call_operand.vmem [shape: f32[16,25], index: 1, kind: input, shape index: {}]
  %s2 = inlined_call_operand.vmem [shape: f32[16,41], index: 2, kind: input, shape index: {}]
  %s3 = inlined_call_operand.vmem [shape: f32[16,49], index: 3, kind: input, shape index: {}]
  %s4 = inlined_call_operand.vmem [shape: f32[2,16,128], index: 4, kind: output, shape index: {}]
  %s5 = sld [smem:[#allocation0]]
  $region49: #{sbd_block_forward.3} parent=0
    _
  %s7 = ssub.s32 1, %s5
  %s8 = scalar_select 0, %s7, %s5
  loop: start=0, step=1, limit=4
  $region2: #{sbd_block_forward.3} parent=0 // loop_pre_header
    _
  $region3: #{sbd_block_forward.3} parent=0 // loop_header
    %s10 = sphi 0, %s14
    %p11 = scmp.ge.s32.totalorder %s10, 4
    %s20 = sphi 0, %s22
    %s23 = sphi 0, %s20
    %s24 = sphi 0, %s23
    %s40 = sphi 0, %s24
    %s44 = sphi 0, %s44
    %s46 = sphi 0, %s44
    %s47 = sphi 0, %s46
    %s61 = sphi 0, %s47
    %s65 = sphi 0, %s65
    %s67 = sphi 0, %s65
    %s68 = sphi 0, %s67
    %s82 = sphi 0, %s68
    %s86 = sphi 0, %s86
    %s88 = sphi 0, %s86
    %s89 = sphi 0, %s88
    %s103 = sphi 0, %s89
    %s109 = sphi 0, %s111
    %s112 = sphi 0, %s109
    %s113 = sphi 0, %s112
    %s129 = sphi 0, %s113
  $region4: #{sbd_block_forward.3} parent=0 // loop_header_branch
    %13 = sbr.rel (%p11) target = $region8
  $region5: #{sbd_block_forward.3} parent=0 // loop_body
    %s15 = ssub.s32 %s10, 1
    %s16 = ssub.s32 %s10, 2
    %s17 = sadd.s32 %s10, 1
    %s18 = ssub.s32 %s10, %s17
    %p19 = scmp.eq.s32.totalorder %s18, 0
    %s21 = sadd.s32 %s20, 1
    %s22 = scalar_select %p19, %s20, %s21
    %p25 = pneg %p19
    %p26 = scmp.eq.s32.totalorder %s10, 1
    %p27 = por %p25, %p26
    %p28 = scmp.ne.s32.totalorder %s20, %s23
    %p29 = scmp.eq.s32.totalorder %s10, 0
    %p30 = por %p28, %p29
    %p31 = scmp.ne.s32.totalorder %s20, %s23
    %p32 = scmp.eq.s32.totalorder %s15, 1
    %p33 = por %p31, %p32
    %p34 = scmp.ne.s32.totalorder %s23, %s24
    %p35 = scmp.eq.s32.totalorder %s15, 0
    %p36 = por %p34, %p35
    %p37 = scmp.ne.s32.totalorder %s23, %s24
    %p38 = scmp.eq.s32.totalorder %s16, 1
    %p39 = por %p37, %p38
    %p41 = scmp.ne.s32.totalorder %s24, %s40
    %p42 = scmp.eq.s32.totalorder %s16, 0
    %p43 = por %p41, %p42
    %s45 = sadd.s32 %s44, 1
    %p48 = scmp.eq.s32.totalorder %s10, 1
    %p49 = scmp.ne.s32.totalorder %s44, %s46
    %p50 = scmp.eq.s32.totalorder %s10, 0
    %p51 = por %p49, %p50
    %p52 = scmp.ne.s32.totalorder %s44, %s46
    %p53 = scmp.eq.s32.totalorder %s15, 1
    %p54 = por %p52, %p53
    %p55 = scmp.ne.s32.totalorder %s46, %s47
    %p56 = scmp.eq.s32.totalorder %s15, 0
    %p57 = por %p55, %p56
    %p58 = scmp.ne.s32.totalorder %s46, %s47
    %p59 = scmp.eq.s32.totalorder %s16, 1
    %p60 = por %p58, %p59
    %p62 = scmp.ne.s32.totalorder %s47, %s61
    %p63 = scmp.eq.s32.totalorder %s16, 0
    %p64 = por %p62, %p63
    %s66 = sadd.s32 %s65, 1
    %p69 = scmp.eq.s32.totalorder %s10, 1
    %p70 = scmp.ne.s32.totalorder %s65, %s67
    %p71 = scmp.eq.s32.totalorder %s10, 0
    %p72 = por %p70, %p71
    %p73 = scmp.ne.s32.totalorder %s65, %s67
    %p74 = scmp.eq.s32.totalorder %s15, 1
    %p75 = por %p73, %p74
    %p76 = scmp.ne.s32.totalorder %s67, %s68
    %p77 = scmp.eq.s32.totalorder %s15, 0
    %p78 = por %p76, %p77
    %p79 = scmp.ne.s32.totalorder %s67, %s68
    %p80 = scmp.eq.s32.totalorder %s16, 1
    %p81 = por %p79, %p80
    %p83 = scmp.ne.s32.totalorder %s68, %s82
    %p84 = scmp.eq.s32.totalorder %s16, 0
    %p85 = por %p83, %p84
    %s87 = sadd.s32 %s86, 1
    %p90 = scmp.eq.s32.totalorder %s10, 1
    %p91 = scmp.ne.s32.totalorder %s86, %s88
    %p92 = scmp.eq.s32.totalorder %s10, 0
    %p93 = por %p91, %p92
    %p94 = scmp.ne.s32.totalorder %s86, %s88
    %p95 = scmp.eq.s32.totalorder %s15, 1
    %p96 = por %p94, %p95
    %p97 = scmp.ne.s32.totalorder %s88, %s89
    %p98 = scmp.eq.s32.totalorder %s15, 0
    %p99 = por %p97, %p98
    %p100 = scmp.ne.s32.totalorder %s88, %s89
    %p101 = scmp.eq.s32.totalorder %s16, 1
    %p102 = por %p100, %p101
    %p104 = scmp.ne.s32.totalorder %s89, %s103
    %p105 = scmp.eq.s32.totalorder %s16, 0
    %p106 = por %p104, %p105
    %s107 = ssub.s32 %s10, %s17
    %p108 = scmp.eq.s32.totalorder %s107, 0
    %s110 = sadd.s32 %s109, 1
    %s111 = scalar_select %p108, %s109, %s110
    %p114 = pneg %p108
    %p115 = scmp.eq.s32.totalorder %s10, 1
    %p116 = por %p114, %p115
    %p117 = scmp.ne.s32.totalorder %s109, %s112
    %p118 = scmp.eq.s32.totalorder %s10, 0
    %p119 = por %p117, %p118
    %p120 = scmp.ne.s32.totalorder %s109, %s112
    %p121 = scmp.eq.s32.totalorder %s15, 1
    %p122 = por %p120, %p121
    %p123 = scmp.ne.s32.totalorder %s112, %s113
    %p124 = scmp.eq.s32.totalorder %s15, 0
    %p125 = por %p123, %p124
    %p126 = scmp.ne.s32.totalorder %s112, %s113
    %p127 = scmp.eq.s32.totalorder %s16, 1
    %p128 = por %p126, %p127
    %p130 = scmp.ne.s32.totalorder %s113, %s129
    %p131 = scmp.eq.s32.totalorder %s16, 0
    %p132 = por %p130, %p131
    %p133 = scmp.le.s32.totalorder 1, %s10
    %p134 = scmp.lt.s32.totalorder %s10, 3
    %p135 = pnand %p133, %p134
    %p136 = pneg %p135
    // Predicated region
    $region9: #{sbd_block_forward.3} parent=5 // pred_check
      _
    $region10: #{sbd_block_forward.3} parent=5 // pred_check_branch
      %138 = sbr.rel (%p135) target = $region12
    $region11: #{sbd_block_forward.3} parent=5 // pred_region
      %s139 = ssub.s32 %s10, 1
      // Predicated region
      $region13: #{sbd_block_forward.3} parent=11 // pred_check
        %p140 = pneg %p57
      $region14: #{sbd_block_forward.3} parent=11 // pred_check_branch
        %142 = sbr.rel (%p140) target = $region16
      $region15: #{sbd_block_forward.3} parent=11 // pred_region
        _
      $region16: #{sbd_block_forward.3} parent=11 // pred_fallthru
        _
      // Predicated region
      $region17: #{sbd_block_forward.3} parent=11 // pred_check
        %p143 = pneg %p78
      $region18: #{sbd_block_forward.3} parent=11 // pred_check_branch
        %145 = sbr.rel (%p143) target = $region20
      $region19: #{sbd_block_forward.3} parent=11 // pred_region
        _
      $region20: #{sbd_block_forward.3} parent=11 // pred_fallthru
        _
      // Predicated region
      $region21: #{sbd_block_forward.3} parent=11 // pred_check
        %p146 = pneg %p99
      $region22: #{sbd_block_forward.3} parent=11 // pred_check_branch
        %148 = sbr.rel (%p146) target = $region24
      $region23: #{sbd_block_forward.3} parent=11 // pred_region
        _
      $region24: #{sbd_block_forward.3} parent=11 // pred_fallthru
        _
    $region12: #{sbd_block_forward.3} parent=5 // pred_fallthru
      _
    %p149 = scmp.lt.s32.totalorder %s10, 2
    // Predicated region
    $region25: #{sbd_block_forward.3} parent=5 // pred_check
      %p150 = pneg %p149
    $region26: #{sbd_block_forward.3} parent=5 // pred_check_branch
      %152 = sbr.rel (%p150) target = $region28
    $region27: #{sbd_block_forward.3} parent=5 // pred_region
      // Predicated region
      $region29: #{sbd_block_forward.3} parent=27 // pred_check
        %p153 = pneg %p30
      $region30: #{sbd_block_forward.3} parent=27 // pred_check_branch
        %155 = sbr.rel (%p153) target = $region32
      $region31: #{sbd_block_forward.3} parent=27 // pred_region
        %p156 = scmp.lt.s32.totalorder %s10, 1
        %s157 = scalar_select %p156, %s10, 1
        %s158 = smul.addr %s157, 8
        %s159 = scalar_lea.vmem %s0, %s158
      $region32: #{sbd_block_forward.3} parent=27 // pred_fallthru
        _
    $region28: #{sbd_block_forward.3} parent=5 // pred_fallthru
      _
    %p160 = scmp.le.s32.totalorder 1, %s10
    %p161 = scmp.lt.s32.totalorder %s10, 3
    %p162 = pnand %p160, %p161
    %p163 = pneg %p162
    // Predicated region
    $region33: #{sbd_block_forward.3} parent=5 // pred_check
      _
    $region34: #{sbd_block_forward.3} parent=5 // pred_check_branch
      %165 = sbr.rel (%p162) target = $region36
    $region35: #{sbd_block_forward.3} parent=5 // pred_region
      %s166 = ssub.s32 %s10, 1
      %p167 = scmp.lt.s32.totalorder %s15, 1
      %s168 = scalar_select %p167, %s15, 1
      %s169 = smul.addr %s168, 8
      %s170 = scalar_lea.vmem %s0, %s169
      %p171 = pneg %p36
      %p172 = pneg %p33
      %p173 = pneg %p57
      %p174 = pneg %p54
      %p175 = pneg %p78
      %p176 = pneg %p75
      %p177 = pneg %p99
      %p178 = pneg %p96
      %p179 = pneg %p125
      %p180 = pneg %p122
      %p181 = scmp.lt.s32.totalorder %s15, 1
      %s182 = scalar_select %p181, %s15, 1
      %s183 = smul.addr %s182, 2
      %s184 = smul.addr %s183, 8
      %s185 = scalar_lea.vmem %s4, %s184
      %p186 = scmp.lt.s32.totalorder %s15, 1
      %s187 = scalar_select %p186, %s15, 1
      %s188 = smul.addr %s187, 8
      %s189 = scalar_lea.vmem %s0, %s188
      %p190 = scmp.lt.s32.totalorder %s15, 1
      %s191 = scalar_select %p190, %s15, 1
      %s192 = smul.addr %s191, 2
      %s193 = smul.addr %s192, 8
      %s194 = scalar_lea.vmem %s4, %s193
      %v195 = vld [vmem:[%s189] sm:$0xff]
      %197 = vrot.lane.b32.xlu0 %v195, 4
      %v198 = vpop.permute.xlu0 %197
      %vm200 = vcmask 31744
      %v201 = vsel %vm200, 0.0, %v198
      %vm202 = vcmask 293888
      %v203 = vsel %vm202, %v201, 0.0
      %205 = vrot.lane.b32.xlu0 %v203, 127
      %v206 = vpop.permute.xlu0 %205
      %207 = vrot.lane.b32.xlu0 %v203, 126
      %v208 = vpop.permute.xlu0 %207
      %v209 = vld [vmem:[%s1] sm:$0xff]
      %v210 = vld [vmem:[%s1 + $0x8] sm:$0xff]
      %212 = vrot.lane.b32.xlu0 %v203, 125
      %v213 = vpop.permute.xlu0 %212
      %214 = vrot.lane.b32.xlu0 %v206, 125
      %v215 = vpop.permute.xlu0 %214
      %216 = vrot.lane.b32.xlu0 %v208, 125
      %v217 = vpop.permute.xlu0 %216
      %218 = vrot.lane.b32.xlu0 1.0, 125
      %v219 = vpop.permute.xlu0 %218
      %vm223 = vcmask 203776
      %v225 = vsel %vm223, %v209, 0
      %v228 = vsel %vm223, %v210, 0
      %vm230 = vcmask 1040384
      %v231 = vsel %vm230, %v219, 0
      %233 = vmatprep.subr.mxu0 0.0
      %234 = vmatpush1.msra.mxu0 0.0
      %235 = vmatprep.subr.mxu0 0.0
      %236 = vmatpush1.msra.mxu0 0.0
      %237 = vmatprep.subr.mxu0 0.0
      %238 = vmatpush1.msra.mxu0 0.0
      %239 = vmatprep.subr.mxu0 0.0
      %240 = vmatpush1.msra.mxu0 0.0
      %241 = vmatprep.subr.mxu0 0.0
      %242 = vmatpush1.msra.mxu0 0.0
      %243 = vmatprep.subr.mxu0 0.0
      %244 = vmatpush1.msra.mxu0 0.0
      %245 = vmatprep.subr.mxu0 0.0
      %246 = vmatpush1.msra.mxu0 0.0
      %247 = vmatprep.subr.mxu0 0.0
      %248 = vmatpush1.msra.mxu0 0.0
      %249 = vmatprep.subr.mxu0 0.0
      %250 = vmatpush1.msra.mxu0 0.0
      %251 = vmatprep.subr.mxu0 0.0
      %252 = vmatpush1.msra.mxu0 0.0
      %253 = vmatprep.subr.mxu0 0.0
      %254 = vmatpush1.msra.mxu0 0.0
      %255 = vmatprep.subr.mxu0 0.0
      %256 = vmatpush1.msra.mxu0 0.0
      %257 = vmatprep.subr.mxu0 0.0
      %258 = vmatpush1.msra.mxu0 %v231
      %259 = vmatprep.subr.mxu0 0.0
      %260 = vmatpush1.msra.mxu0 %v217
      %261 = vmatprep.subr.mxu0 0.0
      %262 = vmatpush1.msra.mxu0 %v215
      %263 = vmatprep.subr.mxu0 0.0
      %264 = vmatpush1.msra.mxu0 %v213
      %265 = vmatprep.subr.mxu0 0.0
      %266 = vmatpush2.msra.mxu0 0.0
      %267 = vmatprep.subr.mxu0 0.0
      %268 = vmatpush2.msra.mxu0 0.0
      %269 = vmatprep.subr.mxu0 0.0
      %270 = vmatpush2.msra.mxu0 0.0
      %271 = vmatprep.subr.mxu0 0.0
      %272 = vmatpush2.msra.mxu0 0.0
      %273 = vmatprep.subr.mxu0 0.0
      %274 = vmatpush2.msra.mxu0 0.0
      %275 = vmatprep.subr.mxu0 0.0
      %276 = vmatpush2.msra.mxu0 0.0
      %277 = vmatprep.subr.mxu0 0.0
      %278 = vmatpush2.msra.mxu0 0.0
      %279 = vmatprep.subr.mxu0 0.0
      %280 = vmatpush2.msra.mxu0 0.0
      %281 = vmatprep.subr.mxu0 0.0
      %282 = vmatpush2.msra.mxu0 0.0
      %283 = vmatprep.subr.mxu0 0.0
      %284 = vmatpush2.msra.mxu0 0.0
      %285 = vmatprep.subr.mxu0 0.0
      %286 = vmatpush2.msra.mxu0 0.0
      %287 = vmatprep.subr.mxu0 0.0
      %288 = vmatpush2.msra.mxu0 0.0
      %289 = vmatprep.subr.mxu0 0.0
      %290 = vmatpush2.msra.mxu0 0.0
      %291 = vmatprep.subr.mxu0 0.0
      %292 = vmatpush2.msra.mxu0 0.0
      %293 = vmatprep.subr.mxu0 0.0
      %294 = vmatpush2.msra.mxu0 0.0
      %295 = vmatprep.subr.mxu0 0.0
      %296 = vmatpush2.msra.mxu0 0.0
      %297 = vmatprep.mubr.f32.mxu0 0.0
      %298 = vmatmul.mubr.f32.gmra.mxu0 %v225
      %v299 = vpop.f32.mrf.mxu0
      %v300 = vadd.f32 0.0, %v299
      %v301 = vpop.f32.mrf.mxu0
      %302 = vmatprep.mubr.f32.mxu0 0.0
      %303 = vmatmul.mubr.f32.gmra.mxu0 %v228
      %v304 = vpop.f32.mrf.mxu0
      %v305 = vadd.f32 0.0, %v304
      %v306 = vpop.f32.mrf.mxu0
      %307 = vdwg.mxu0
      %vm308 = vcmp.ge.f32.partialorder %v300, 0.0
      %vm309 = vcmp.ge.f32.partialorder %v305, 0.0
      %v310 = vmul.f32 %v300, 0.2
      %v311 = vmul.f32 %v305, 0.2
      %v312 = vsel %vm308, %v300, %v310
      %v313 = vsel %vm309, %v305, %v311
      %315 = vrot.lane.b32.xlu0 %v203, 124
      %v316 = vpop.permute.xlu0 %315
      %318 = vrot.lane.b32.xlu0 %v203, 122
      %v319 = vpop.permute.xlu0 %318
      %321 = vrot.lane.b32.xlu0 %v203, 120
      %v322 = vpop.permute.xlu0 %321
      %v324 = vld [vmem:[%s2] sm:$0xff]
      %v325 = vld [vmem:[%s2 + $0x8] sm:$0xff]
      %vm326 = vcmask 334848
      %v328 = vsel %vm326, %v324, 0
      %v331 = vsel %vm326, %v325, 0
      %v333 = vsel %vm230, 1.0, 0
      %335 = vmatprep.subr.mxu0 0.0
      %336 = vmatpush1.msra.mxu0 0.0
      %337 = vmatprep.subr.mxu0 0.0
      %338 = vmatpush1.msra.mxu0 0.0
      %339 = vmatprep.subr.mxu0 0.0
      %340 = vmatpush1.msra.mxu0 0.0
      %341 = vmatprep.subr.mxu0 0.0
      %342 = vmatpush1.msra.mxu0 0.0
      %343 = vmatprep.subr.mxu0 0.0
      %344 = vmatpush1.msra.mxu0 0.0
      %345 = vmatprep.subr.mxu0 0.0
      %346 = vmatpush1.msra.mxu0 0.0
      %347 = vmatprep.subr.mxu0 0.0
      %348 = vmatpush1.msra.mxu0 0.0
      %349 = vmatprep.subr.mxu0 0.0
      %350 = vmatpush1.msra.mxu0 0.0
      %351 = vmatprep.subr.mxu0 0.0
      %352 = vmatpush1.msra.mxu0 0.0
      %353 = vmatprep.subr.mxu0 0.0
      %354 = vmatpush1.msra.mxu0 0.0
      %355 = vmatprep.subr.mxu0 0.0
      %356 = vmatpush1.msra.mxu0 %v333
      %357 = vmatprep.subr.mxu0 0.0
      %358 = vmatpush1.msra.mxu0 %v322
      %359 = vmatprep.subr.mxu0 0.0
      %360 = vmatpush1.msra.mxu0 %v319
      %361 = vmatprep.subr.mxu0 0.0
      %362 = vmatpush1.msra.mxu0 %v316
      %363 = vmatprep.subr.mxu0 0.0
      %364 = vmatpush1.msra.mxu0 %v208
      %365 = vmatprep.subr.mxu0 0.0
      %366 = vmatpush1.msra.mxu0 %v203
      %367 = vmatprep.subr.mxu0 0.0
      %368 = vmatpush2.msra.mxu0 0.0
      %369 = vmatprep.subr.mxu0 0.0
      %370 = vmatpush2.msra.mxu0 0.0
      %371 = vmatprep.subr.mxu0 0.0
      %372 = vmatpush2.msra.mxu0 0.0
      %373 = vmatprep.subr.mxu0 0.0
      %374 = vmatpush2.msra.mxu0 0.0
      %375 = vmatprep.subr.mxu0 0.0
      %376 = vmatpush2.msra.mxu0 0.0
      %377 = vmatprep.subr.mxu0 0.0
      %378 = vmatpush2.msra.mxu0 0.0
      %379 = vmatprep.subr.mxu0 0.0
      %380 = vmatpush2.msra.mxu0 0.0
      %381 = vmatprep.subr.mxu0 0.0
      %382 = vmatpush2.msra.mxu0 0.0
      %383 = vmatprep.subr.mxu0 0.0
      %384 = vmatpush2.msra.mxu0 0.0
      %385 = vmatprep.subr.mxu0 0.0
      %386 = vmatpush2.msra.mxu0 0.0
      %387 = vmatprep.subr.mxu0 0.0
      %388 = vmatpush2.msra.mxu0 0.0
      %389 = vmatprep.subr.mxu0 0.0
      %390 = vmatpush2.msra.mxu0 0.0
      %391 = vmatprep.subr.mxu0 0.0
      %392 = vmatpush2.msra.mxu0 0.0
      %393 = vmatprep.subr.mxu0 0.0
      %394 = vmatpush2.msra.mxu0 0.0
      %395 = vmatprep.subr.mxu0 0.0
      %396 = vmatpush2.msra.mxu0 0.0
      %397 = vmatprep.subr.mxu0 0.0
      %398 = vmatpush2.msra.mxu0 0.0
      %399 = vmatprep.mubr.f32.mxu0 0.0
      %400 = vmatmul.mubr.f32.gmra.mxu0 %v328
      %v401 = vpop.f32.mrf.mxu0
      %v402 = vadd.f32 0.0, %v401
      %v403 = vpop.f32.mrf.mxu0
      %404 = vmatprep.mubr.f32.mxu0 0.0
      %405 = vmatmul.mubr.f32.gmra.mxu0 %v331
      %v406 = vpop.f32.mrf.mxu0
      %v407 = vadd.f32 0.0, %v406
      %v408 = vpop.f32.mrf.mxu0
      %409 = vdwg.mxu0
      %vm410 = vcmp.ge.f32.partialorder %v402, 0.0
      %vm411 = vcmp.ge.f32.partialorder %v407, 0.0
      %v412 = vmul.f32 %v402, 0.2
      %v413 = vmul.f32 %v407, 0.2
      %v414 = vsel %vm410, %v402, %v412
      %v415 = vsel %vm411, %v407, %v413
      %v416 = vadd.f32 %v312, %v414
      %v417 = vadd.f32 %v313, %v415
      %420 = vrot.lane.b32.xlu0 %v416, 4
      %v421 = vpop.permute.xlu0 %420
      %422 = vrot.lane.b32.xlu0 %v417, 4
      %v423 = vpop.permute.xlu0 %422
      %v426 = vsel %vm200, 0.0, %v421
      %v427 = vsel %vm200, 0.0, %v423
      %v428 = vsel %vm202, %v426, 0.0
      %v429 = vsel %vm202, %v427, 0.0
      %432 = vrot.lane.b32.xlu0 %v428, 127
      %v433 = vpop.permute.xlu0 %432
      %434 = vrot.lane.b32.xlu0 %v429, 127
      %v435 = vpop.permute.xlu0 %434
      %438 = vrot.lane.b32.xlu0 %v428, 126
      %v439 = vpop.permute.xlu0 %438
      %440 = vrot.lane.b32.xlu0 %v429, 126
      %v441 = vpop.permute.xlu0 %440
      %v444 = vld [vmem:[%s3] sm:$0xff]
      %v445 = vld [vmem:[%s3 + $0x8] sm:$0xff]
      %vm446 = vcmask 400384
      %v448 = vsel %vm446, %v444, 0
      %v451 = vsel %vm446, %v445, 0
      %453 = vmatprep.subr.mxu0 0.0
      %454 = vmatpush1.msra.mxu0 0.0
      %455 = vmatprep.subr.mxu0 0.0
      %456 = vmatpush1.msra.mxu0 0.0
      %457 = vmatprep.subr.mxu0 0.0
      %458 = vmatpush1.msra.mxu0 0.0
      %459 = vmatprep.subr.mxu0 0.0
      %460 = vmatpush1.msra.mxu0 0.0
      %461 = vmatprep.subr.mxu0 0.0
      %462 = vmatpush1.msra.mxu0 0.0
      %463 = vmatprep.subr.mxu0 0.0
      %464 = vmatpush1.msra.mxu0 0.0
      %465 = vmatprep.subr.mxu0 0.0
      %466 = vmatpush1.msra.mxu0 0.0
      %467 = vmatprep.subr.mxu0 0.0
      %468 = vmatpush1.msra.mxu0 0.0
      %469 = vmatprep.subr.mxu0 0.0
      %470 = vmatpush1.msra.mxu0 0.0
      %471 = vmatprep.subr.mxu0 0.0
      %472 = vmatpush1.msra.mxu0 %v333
      %473 = vmatprep.subr.mxu0 0.0
      %474 = vmatpush1.msra.mxu0 %v441
      %475 = vmatprep.subr.mxu0 0.0
      %476 = vmatpush1.msra.mxu0 %v439
      %477 = vmatprep.subr.mxu0 0.0
      %478 = vmatpush1.msra.mxu0 %v435
      %479 = vmatprep.subr.mxu0 0.0
      %480 = vmatpush1.msra.mxu0 %v433
      %481 = vmatprep.subr.mxu0 0.0
      %482 = vmatpush1.msra.mxu0 %v429
      %483 = vmatprep.subr.mxu0 0.0
      %484 = vmatpush1.msra.mxu0 %v428
      %485 = vmatprep.subr.mxu0 0.0
      %486 = vmatpush2.msra.mxu0 0.0
      %487 = vmatprep.subr.mxu0 0.0
      %488 = vmatpush2.msra.mxu0 0.0
      %489 = vmatprep.subr.mxu0 0.0
      %490 = vmatpush2.msra.mxu0 0.0
      %491 = vmatprep.subr.mxu0 0.0
      %492 = vmatpush2.msra.mxu0 0.0
      %493 = vmatprep.subr.mxu0 0.0
      %494 = vmatpush2.msra.mxu0 0.0
      %495 = vmatprep.subr.mxu0 0.0
      %496 = vmatpush2.msra.mxu0 0.0
      %497 = vmatprep.subr.mxu0 0.0
      %498 = vmatpush2.msra.mxu0 0.0
      %499 = vmatprep.subr.mxu0 0.0
      %500 = vmatpush2.msra.mxu0 0.0
      %501 = vmatprep.subr.mxu0 0.0
      %502 = vmatpush2.msra.mxu0 0.0
      %503 = vmatprep.subr.mxu0 0.0
      %504 = vmatpush2.msra.mxu0 0.0
      %505 = vmatprep.subr.mxu0 0.0
      %506 = vmatpush2.msra.mxu0 0.0
      %507 = vmatprep.subr.mxu0 0.0
      %508 = vmatpush2.msra.mxu0 0.0
      %509 = vmatprep.subr.mxu0 0.0
      %510 = vmatpush2.msra.mxu0 0.0
      %511 = vmatprep.subr.mxu0 0.0
      %512 = vmatpush2.msra.mxu0 0.0
      %513 = vmatprep.subr.mxu0 0.0
      %514 = vmatpush2.msra.mxu0 0.0
      %515 = vmatprep.subr.mxu0 0.0
      %516 = vmatpush2.msra.mxu0 0.0
      %517 = vmatprep.mubr.f32.mxu0 0.0
      %518 = vmatmul.mubr.f32.gmra.mxu0 %v448
      %v519 = vpop.f32.mrf.mxu0
      %v520 = vadd.f32 0.0, %v519
      %v521 = vpop.f32.mrf.mxu0
      %522 = vmatprep.mubr.f32.mxu0 0.0
      %523 = vmatmul.mubr.f32.gmra.mxu0 %v451
      %v524 = vpop.f32.mrf.mxu0
      %v525 = vadd.f32 0.0, %v524
      %v526 = vpop.f32.mrf.mxu0
      %527 = vdwg.mxu0
      %vm528 = vcmp.ge.f32.partialorder %v520, 0.0
      %vm529 = vcmp.ge.f32.partialorder %v525, 0.0
      %v530 = vmul.f32 %v520, 0.2
      %v531 = vmul.f32 %v525, 0.2
      %v532 = vsel %vm528, %v520, %v530
      %v533 = vsel %vm529, %v525, %v531
      %vm534 = vcmask 310272
      %v535 = vsel %vm534, %v532, 0.0
      %v536 = vsel %vm534, %v533, 0.0
      %537 = vst [vmem:[%s194] sm:$0xff] %v535
      %538 = vst [vmem:[%s194 + $0x8] sm:$0xff] %v536
      %p539 = scmp.lt.s32.totalorder %s15, 1
      %s540 = scalar_select %p539, %s15, 1
      %s541 = smul.addr %s540, 2
      %s542 = smul.addr %s541, 8
      %s543 = scalar_lea.vmem %s4, %s542
      // Predicated region
      $region37: #{sbd_block_forward.3} parent=35 // pred_check
        %p544 = pneg %p122
      $region38: #{sbd_block_forward.3} parent=35 // pred_check_branch
        %546 = sbr.rel (%p544) target = $region40
      $region39: #{sbd_block_forward.3} parent=35 // pred_region
        _
      $region40: #{sbd_block_forward.3} parent=35 // pred_fallthru
        _
    $region36: #{sbd_block_forward.3} parent=5 // pred_fallthru
      _
    %p547 = scmp.le.s32.totalorder 2, %s10
    // Predicated region
    $region41: #{sbd_block_forward.3} parent=5 // pred_check
      %p548 = pneg %p547
    $region42: #{sbd_block_forward.3} parent=5 // pred_check_branch
      %550 = sbr.rel (%p548) target = $region44
    $region43: #{sbd_block_forward.3} parent=5 // pred_region
      %s551 = ssub.s32 %s10, 2
      // Predicated region
      $region45: #{sbd_block_forward.3} parent=43 // pred_check
        %p552 = pneg %p128
      $region46: #{sbd_block_forward.3} parent=43 // pred_check_branch
        %554 = sbr.rel (%p552) target = $region48
      $region47: #{sbd_block_forward.3} parent=43 // pred_region
        %p555 = scmp.lt.s32.totalorder %s16, 1
        %s556 = scalar_select %p555, %s16, 1
        %s557 = smul.addr %s556, 2
        %s558 = smul.addr %s557, 8
        %s559 = scalar_lea.vmem %s4, %s558
      $region48: #{sbd_block_forward.3} parent=43 // pred_fallthru
        _
    $region44: #{sbd_block_forward.3} parent=5 // pred_fallthru
      _
  $region6: #{sbd_block_forward.3} parent=0 // loop_footer
    %s14 = sadd.s32 1, %s10
  $region7: #{sbd_block_forward.3} parent=0 // loop_footer_branch
    %9 = sbr.rel target = $region3
  $region8: #{sbd_block_forward.3} parent=0 // loop_exit
    _

// kernel: sbd_block_forward.4
$region0: #{sbd_block_forward.4}
  #allocation0 [shape = 'u32[]', space=smem, size = 0x4, offset = 0x4, fixed_abs, tag = 'smem constant byte address 0x4 - core index']
  #allocation1 [shape = 'u32[144,128]{1,0:T(1,128)}', space=vmem, size = 0x12000, scoped, tag = 'internal scratch']
  %s0 = inlined_call_operand.vmem [shape: f32[2,16,128], index: 0, kind: input, shape index: {}]
  %s1 = inlined_call_operand.vmem [shape: f32[32,49], index: 1, kind: input, shape index: {}]
  %s2 = inlined_call_operand.vmem [shape: f32[32,81], index: 2, kind: input, shape index: {}]
  %s3 = inlined_call_operand.vmem [shape: f32[32,97], index: 3, kind: input, shape index: {}]
  %s4 = inlined_call_operand.vmem [shape: f32[2,32,128], index: 4, kind: output, shape index: {}]
  %s5 = sld [smem:[#allocation0]]
  $region49: #{sbd_block_forward.4} parent=0
    _
  %s7 = ssub.s32 1, %s5
  %s8 = scalar_select 0, %s7, %s5
  loop: start=0, step=1, limit=4
  $region2: #{sbd_block_forward.4} parent=0 // loop_pre_header
    _
  $region3: #{sbd_block_forward.4} parent=0 // loop_header
    %s10 = sphi 0, %s14
    %p11 = scmp.ge.s32.totalorder %s10, 4
    %s20 = sphi 0, %s22
    %s23 = sphi 0, %s20
    %s24 = sphi 0, %s23
    %s40 = sphi 0, %s24
    %s44 = sphi 0, %s44
    %s46 = sphi 0, %s44
    %s47 = sphi 0, %s46
    %s61 = sphi 0, %s47
    %s65 = sphi 0, %s65
    %s67 = sphi 0, %s65
    %s68 = sphi 0, %s67
    %s82 = sphi 0, %s68
    %s86 = sphi 0, %s86
    %s88 = sphi 0, %s86
    %s89 = sphi 0, %s88
    %s103 = sphi 0, %s89
    %s109 = sphi 0, %s111
    %s112 = sphi 0, %s109
    %s113 = sphi 0, %s112
    %s129 = sphi 0, %s113
  $region4: #{sbd_block_forward.4} parent=0 // loop_header_branch
    %13 = sbr.rel (%p11) target = $region8
  $region5: #{sbd_block_forward.4} parent=0 // loop_body
    %s15 = ssub.s32 %s10, 1
    %s16 = ssub.s32 %s10, 2
    %s17 = sadd.s32 %s10, 1
    %s18 = ssub.s32 %s10, %s17
    %p19 = scmp.eq.s32.totalorder %s18, 0
    %s21 = sadd.s32 %s20, 1
    %s22 = scalar_select %p19, %s20, %s21
    %p25 = pneg %p19
    %p26 = scmp.eq.s32.totalorder %s10, 1
    %p27 = por %p25, %p26
    %p28 = scmp.ne.s32.totalorder %s20, %s23
    %p29 = scmp.eq.s32.totalorder %s10, 0
    %p30 = por %p28, %p29
    %p31 = scmp.ne.s32.totalorder %s20, %s23
    %p32 = scmp.eq.s32.totalorder %s15, 1
    %p33 = por %p31, %p32
    %p34 = scmp.ne.s32.totalorder %s23, %s24
    %p35 = scmp.eq.s32.totalorder %s15, 0
    %p36 = por %p34, %p35
    %p37 = scmp.ne.s32.totalorder %s23, %s24
    %p38 = scmp.eq.s32.totalorder %s16, 1
    %p39 = por %p37, %p38
    %p41 = scmp.ne.s32.totalorder %s24, %s40
    %p42 = scmp.eq.s32.totalorder %s16, 0
    %p43 = por %p41, %p42
    %s45 = sadd.s32 %s44, 1
    %p48 = scmp.eq.s32.totalorder %s10, 1
    %p49 = scmp.ne.s32.totalorder %s44, %s46
    %p50 = scmp.eq.s32.totalorder %s10, 0
    %p51 = por %p49, %p50
    %p52 = scmp.ne.s32.totalorder %s44, %s46
    %p53 = scmp.eq.s32.totalorder %s15, 1
    %p54 = por %p52, %p53
    %p55 = scmp.ne.s32.totalorder %s46, %s47
    %p56 = scmp.eq.s32.totalorder %s15, 0
    %p57 = por %p55, %p56
    %p58 = scmp.ne.s32.totalorder %s46, %s47
    %p59 = scmp.eq.s32.totalorder %s16, 1
    %p60 = por %p58, %p59
    %p62 = scmp.ne.s32.totalorder %s47, %s61
    %p63 = scmp.eq.s32.totalorder %s16, 0
    %p64 = por %p62, %p63
    %s66 = sadd.s32 %s65, 1
    %p69 = scmp.eq.s32.totalorder %s10, 1
    %p70 = scmp.ne.s32.totalorder %s65, %s67
    %p71 = scmp.eq.s32.totalorder %s10, 0
    %p72 = por %p70, %p71
    %p73 = scmp.ne.s32.totalorder %s65, %s67
    %p74 = scmp.eq.s32.totalorder %s15, 1
    %p75 = por %p73, %p74
    %p76 = scmp.ne.s32.totalorder %s67, %s68
    %p77 = scmp.eq.s32.totalorder %s15, 0
    %p78 = por %p76, %p77
    %p79 = scmp.ne.s32.totalorder %s67, %s68
    %p80 = scmp.eq.s32.totalorder %s16, 1
    %p81 = por %p79, %p80
    %p83 = scmp.ne.s32.totalorder %s68, %s82
    %p84 = scmp.eq.s32.totalorder %s16, 0
    %p85 = por %p83, %p84
    %s87 = sadd.s32 %s86, 1
    %p90 = scmp.eq.s32.totalorder %s10, 1
    %p91 = scmp.ne.s32.totalorder %s86, %s88
    %p92 = scmp.eq.s32.totalorder %s10, 0
    %p93 = por %p91, %p92
    %p94 = scmp.ne.s32.totalorder %s86, %s88
    %p95 = scmp.eq.s32.totalorder %s15, 1
    %p96 = por %p94, %p95
    %p97 = scmp.ne.s32.totalorder %s88, %s89
    %p98 = scmp.eq.s32.totalorder %s15, 0
    %p99 = por %p97, %p98
    %p100 = scmp.ne.s32.totalorder %s88, %s89
    %p101 = scmp.eq.s32.totalorder %s16, 1
    %p102 = por %p100, %p101
    %p104 = scmp.ne.s32.totalorder %s89, %s103
    %p105 = scmp.eq.s32.totalorder %s16, 0
    %p106 = por %p104, %p105
    %s107 = ssub.s32 %s10, %s17
    %p108 = scmp.eq.s32.totalorder %s107, 0
    %s110 = sadd.s32 %s109, 1
    %s111 = scalar_select %p108, %s109, %s110
    %p114 = pneg %p108
    %p115 = scmp.eq.s32.totalorder %s10, 1
    %p116 = por %p114, %p115
    %p117 = scmp.ne.s32.totalorder %s109, %s112
    %p118 = scmp.eq.s32.totalorder %s10, 0
    %p119 = por %p117, %p118
    %p120 = scmp.ne.s32.totalorder %s109, %s112
    %p121 = scmp.eq.s32.totalorder %s15, 1
    %p122 = por %p120, %p121
    %p123 = scmp.ne.s32.totalorder %s112, %s113
    %p124 = scmp.eq.s32.totalorder %s15, 0
    %p125 = por %p123, %p124
    %p126 = scmp.ne.s32.totalorder %s112, %s113
    %p127 = scmp.eq.s32.totalorder %s16, 1
    %p128 = por %p126, %p127
    %p130 = scmp.ne.s32.totalorder %s113, %s129
    %p131 = scmp.eq.s32.totalorder %s16, 0
    %p132 = por %p130, %p131
    %p133 = scmp.le.s32.totalorder 1, %s10
    %p134 = scmp.lt.s32.totalorder %s10, 3
    %p135 = pnand %p133, %p134
    %p136 = pneg %p135
    // Predicated region
    $region9: #{sbd_block_forward.4} parent=5 // pred_check
      _
    $region10: #{sbd_block_forward.4} parent=5 // pred_check_branch
      %138 = sbr.rel (%p135) target = $region12
    $region11: #{sbd_block_forward.4} parent=5 // pred_region
      %s139 = ssub.s32 %s10, 1
      // Predicated region
      $region13: #{sbd_block_forward.4} parent=11 // pred_check
        %p140 = pneg %p57
      $region14: #{sbd_block_forward.4} parent=11 // pred_check_branch
        %142 = sbr.rel (%p140) target = $region16
      $region15: #{sbd_block_forward.4} parent=11 // pred_region
        _
      $region16: #{sbd_block_forward.4} parent=11 // pred_fallthru
        _
      // Predicated region
      $region17: #{sbd_block_forward.4} parent=11 // pred_check
        %p143 = pneg %p78
      $region18: #{sbd_block_forward.4} parent=11 // pred_check_branch
        %145 = sbr.rel (%p143) target = $region20
      $region19: #{sbd_block_forward.4} parent=11 // pred_region
        _
      $region20: #{sbd_block_forward.4} parent=11 // pred_fallthru
        _
      // Predicated region
      $region21: #{sbd_block_forward.4} parent=11 // pred_check
        %p146 = pneg %p99
      $region22: #{sbd_block_forward.4} parent=11 // pred_check_branch
        %148 = sbr.rel (%p146) target = $region24
      $region23: #{sbd_block_forward.4} parent=11 // pred_region
        _
      $region24: #{sbd_block_forward.4} parent=11 // pred_fallthru
        _
    $region12: #{sbd_block_forward.4} parent=5 // pred_fallthru
      _
    %p149 = scmp.lt.s32.totalorder %s10, 2
    // Predicated region
    $region25: #{sbd_block_forward.4} parent=5 // pred_check
      %p150 = pneg %p149
    $region26: #{sbd_block_forward.4} parent=5 // pred_check_branch
      %152 = sbr.rel (%p150) target = $region28
    $region27: #{sbd_block_forward.4} parent=5 // pred_region
      // Predicated region
      $region29: #{sbd_block_forward.4} parent=27 // pred_check
        %p153 = pneg %p30
      $region30: #{sbd_block_forward.4} parent=27 // pred_check_branch
        %155 = sbr.rel (%p153) target = $region32
      $region31: #{sbd_block_forward.4} parent=27 // pred_region
        %p156 = scmp.lt.s32.totalorder %s10, 1
        %s157 = scalar_select %p156, %s10, 1
        %s158 = smul.addr %s157, 2
        %s159 = smul.addr %s158, 8
        %s160 = scalar_lea.vmem %s0, %s159
      $region32: #{sbd_block_forward.4} parent=27 // pred_fallthru
        _
    $region28: #{sbd_block_forward.4} parent=5 // pred_fallthru
      _
    %p161 = scmp.le.s32.totalorder 1, %s10
    %p162 = scmp.lt.s32.totalorder %s10, 3
    %p163 = pnand %p161, %p162
    %p164 = pneg %p163
    // Predicated region
    $region33: #{sbd_block_forward.4} parent=5 // pred_check
      _
    $region34: #{sbd_block_forward.4} parent=5 // pred_check_branch
      %166 = sbr.rel (%p163) target = $region36
    $region35: #{sbd_block_forward.4} parent=5 // pred_region
      %s167 = ssub.s32 %s10, 1
      %p168 = scmp.lt.s32.totalorder %s15, 1
      %s169 = scalar_select %p168, %s15, 1
      %s170 = smul.addr %s169, 2
      %s171 = smul.addr %s170, 8
      %s172 = scalar_lea.vmem %s0, %s171
      %p173 = pneg %p36
      %p174 = pneg %p33
      %p175 = pneg %p57
      %p176 = pneg %p54
      %p177 = pneg %p78
      %p178 = pneg %p75
      %p179 = pneg %p99
      %p180 = pneg %p96
      %p181 = pneg %p125
      %p182 = pneg %p122
      %p183 = scmp.lt.s32.totalorder %s15, 1
      %s184 = scalar_select %p183, %s15, 1
      %s185 = smul.addr %s184, 4
      %s186 = smul.addr %s185, 8
      %s187 = scalar_lea.vmem %s4, %s186
      %p188 = scmp.lt.s32.totalorder %s15, 1
      %s189 = scalar_select %p188, %s15, 1
      %s190 = smul.addr %s189, 2
      %s191 = smul.addr %s190, 8
      %s192 = scalar_lea.vmem %s0, %s191
      %p193 = scmp.lt.s32.totalorder %s15, 1
      %s194 = scalar_select %p193, %s15, 1
      %s195 = smul.addr %s194, 4
      %s196 = smul.addr %s195, 8
      %s197 = scalar_lea.vmem %s4, %s196
      %v198 = vld [vmem:[%s192] sm:$0xff]
      %v199 = vld [vmem:[%s192 + $0x8] sm:$0xff]
      %202 = vrot.lane.b32.xlu0 %v198, 4
      %v203 = vpop.permute.xlu0 %202
      %204 = vrot.lane.b32.xlu0 %v199, 4
      %v205 = vpop.permute.xlu0 %204
      %vm208 = vcmask 31744
      %v209 = vsel %vm208, 0.0, %v203
      %v210 = vsel %vm208, 0.0, %v205
      %vm211 = vcmask 343040
      %v212 = vsel %vm211, %v209, 0.0
      %v213 = vsel %vm211, %v210, 0.0
      %216 = vrot.lane.b32.xlu0 %v212, 127
      %v217 = vpop.permute.xlu0 %216
      %218 = vrot.lane.b32.xlu0 %v213, 127
      %v219 = vpop.permute.xlu0 %218
      %220 = vrot.lane.b32.xlu0 %v212, 126
      %v221 = vpop.permute.xlu0 %220
      %222 = vrot.lane.b32.xlu0 %v213, 126
      %v223 = vpop.permute.xlu0 %222
      %v224 = vld [vmem:[%s1] sm:$0xff]
      %v225 = vld [vmem:[%s1 + $0x8] sm:$0xff]
      %v226 = vld [vmem:[%s1 + $0x10] sm:$0xff]
      %v227 = vld [vmem:[%s1 + $0x18] sm:$0xff]
      %229 = vrot.lane.b32.xlu0 %v212, 125
      %v230 = vpop.permute.xlu0 %229
      %231 = vrot.lane.b32.xlu0 %v213, 125
      %v232 = vpop.permute.xlu0 %231
      %233 = vrot.lane.b32.xlu0 %v217, 125
      %v234 = vpop.permute.xlu0 %233
      %235 = vrot.lane.b32.xlu0 %v219, 125
      %v236 = vpop.permute.xlu0 %235
      %237 = vrot.lane.b32.xlu0 %v221, 125
      %v238 = vpop.permute.xlu0 %237
      %239 = vrot.lane.b32.xlu0 %v223, 125
      %v240 = vpop.permute.xlu0 %239
      %241 = vrot.lane.b32.xlu0 1.0, 125
      %v242 = vpop.permute.xlu0 %241
      %vm249 = vcmask 400384
      %v251 = vsel %vm249, %v224, 0
      %v254 = vsel %vm249, %v225, 0
      %v257 = vsel %vm249, %v226, 0
      %v260 = vsel %vm249, %v227, 0
      %vm262 = vcmask 1040384
      %v263 = vsel %vm262, %v242, 0
      %265 = vmatprep.subr.mxu0 0.0
      %266 = vmatpush1.msra.mxu0 0.0
      %267 = vmatprep.subr.mxu0 0.0
      %268 = vmatpush1.msra.mxu0 0.0
      %269 = vmatprep.subr.mxu0 0.0
      %270 = vmatpush1.msra.mxu0 0.0
      %271 = vmatprep.subr.mxu0 0.0
      %272 = vmatpush1.msra.mxu0 0.0
      %273 = vmatprep.subr.mxu0 0.0
      %274 = vmatpush1.msra.mxu0 0.0
      %275 = vmatprep.subr.mxu0 0.0
      %276 = vmatpush1.msra.mxu0 0.0
      %277 = vmatprep.subr.mxu0 0.0
      %278 = vmatpush1.msra.mxu0 0.0
      %279 = vmatprep.subr.mxu0 0.0
      %280 = vmatpush1.msra.mxu0 0.0
      %281 = vmatprep.subr.mxu0 0.0
      %282 = vmatpush1.msra.mxu0 0.0
      %283 = vmatprep.subr.mxu0 0.0
      %284 = vmatpush1.msra.mxu0 %v263
      %285 = vmatprep.subr.mxu0 0.0
      %286 = vmatpush1.msra.mxu0 %v240
      %287 = vmatprep.subr.mxu0 0.0
      %288 = vmatpush1.msra.mxu0 %v238
      %289 = vmatprep.subr.mxu0 0.0
      %290 = vmatpush1.msra.mxu0 %v236
      %291 = vmatprep.subr.mxu0 0.0
      %292 = vmatpush1.msra.mxu0 %v234
      %293 = vmatprep.subr.mxu0 0.0
      %294 = vmatpush1.msra.mxu0 %v232
      %295 = vmatprep.subr.mxu0 0.0
      %296 = vmatpush1.msra.mxu0 %v230
      %297 = vmatprep.subr.mxu0 0.0
      %298 = vmatpush2.msra.mxu0 0.0
      %299 = vmatprep.subr.mxu0 0.0
      %300 = vmatpush2.msra.mxu0 0.0
      %301 = vmatprep.subr.mxu0 0.0
      %302 = vmatpush2.msra.mxu0 0.0
      %303 = vmatprep.subr.mxu0 0.0
      %304 = vmatpush2.msra.mxu0 0.0
      %305 = vmatprep.subr.mxu0 0.0
      %306 = vmatpush2.msra.mxu0 0.0
      %307 = vmatprep.subr.mxu0 0.0
      %308 = vmatpush2.msra.mxu0 0.0
      %309 = vmatprep.subr.mxu0 0.0
      %310 = vmatpush2.msra.mxu0 0.0
      %311 = vmatprep.subr.mxu0 0.0
      %312 = vmatpush2.msra.mxu0 0.0
      %313 = vmatprep.subr.mxu0 0.0
      %314 = vmatpush2.msra.mxu0 0.0
      %315 = vmatprep.subr.mxu0 0.0
      %316 = vmatpush2.msra.mxu0 0.0
      %317 = vmatprep.subr.mxu0 0.0
      %318 = vmatpush2.msra.mxu0 0.0
      %319 = vmatprep.subr.mxu0 0.0
      %320 = vmatpush2.msra.mxu0 0.0
      %321 = vmatprep.subr.mxu0 0.0
      %322 = vmatpush2.msra.mxu0 0.0
      %323 = vmatprep.subr.mxu0 0.0
      %324 = vmatpush2.msra.mxu0 0.0
      %325 = vmatprep.subr.mxu0 0.0
      %326 = vmatpush2.msra.mxu0 0.0
      %327 = vmatprep.subr.mxu0 0.0
      %328 = vmatpush2.msra.mxu0 0.0
      %329 = vmatprep.mubr.f32.mxu0 0.0
      %330 = vmatmul.mubr.f32.gmra.mxu0 %v251
      %v331 = vpop.f32.mrf.mxu0
      %v332 = vadd.f32 0.0, %v331
      %v333 = vpop.f32.mrf.mxu0
      %334 = vmatprep.mubr.f32.mxu0 0.0
      %335 = vmatmul.mubr.f32.gmra.mxu0 %v254
      %v336 = vpop.f32.mrf.mxu0
      %v337 = vadd.f32 0.0, %v336
      %v338 = vpop.f32.mrf.mxu0
      %339 = vmatprep.mubr.f32.mxu0 0.0
      %340 = vmatmul.mubr.f32.gmra.mxu0 %v257
      %v341 = vpop.f32.mrf.mxu0
      %v342 = vadd.f32 0.0, %v341
      %v343 = vpop.f32.mrf.mxu0
      %344 = vmatprep.mubr.f32.mxu0 0.0
      %345 = vmatmul.mubr.f32.gmra.mxu0 %v260
      %v346 = vpop.f32.mrf.mxu0
      %v347 = vadd.f32 0.0, %v346
      %v348 = vpop.f32.mrf.mxu0
      %349 = vdwg.mxu0
      %vm350 = vcmp.ge.f32.partialorder %v332, 0.0
      %vm351 = vcmp.ge.f32.partialorder %v337, 0.0
      %vm352 = vcmp.ge.f32.partialorder %v342, 0.0
      %vm353 = vcmp.ge.f32.partialorder %v347, 0.0
      %v354 = vmul.f32 %v332, 0.2
      %v355 = vmul.f32 %v337, 0.2
      %v356 = vmul.f32 %v342, 0.2
      %v357 = vmul.f32 %v347, 0.2
      %v358 = vsel %vm350, %v332, %v354
      %v359 = vsel %vm351, %v337, %v355
      %v360 = vsel %vm352, %v342, %v356
      %v361 = vsel %vm353, %v347, %v357
      %364 = vrot.lane.b32.xlu0 %v212, 124
      %v365 = vpop.permute.xlu0 %364
      %366 = vrot.lane.b32.xlu0 %v213, 124
      %v367 = vpop.permute.xlu0 %366
      %370 = vrot.lane.b32.xlu0 %v212, 122
      %v371 = vpop.permute.xlu0 %370
      %372 = vrot.lane.b32.xlu0 %v213, 122
      %v373 = vpop.permute.xlu0 %372
      %376 = vrot.lane.b32.xlu0 %v212, 120
      %v377 = vpop.permute.xlu0 %376
      %378 = vrot.lane.b32.xlu0 %v213, 120
      %v379 = vpop.permute.xlu0 %378
      %v382 = vld [vmem:[%s2] sm:$0xff]
      %v383 = vld [vmem:[%s2 + $0x8] sm:$0xff]
      %v384 = vld [vmem:[%s2 + $0x10] sm:$0xff]
      %v385 = vld [vmem:[%s2 + $0x18] sm:$0xff]
      %vm386 = vcmask 662528
      %v388 = vsel %vm386, %v382, 0
      %v391 = vsel %vm386, %v383, 0
      %v394 = vsel %vm386, %v384, 0
      %v397 = vsel %vm386, %v385, 0
      %v399 = vsel %vm262, 1.0, 0
      %401 = vmatprep.subr.mxu0 0.0
      %402 = vmatpush1.msra.mxu0 0.0
      %403 = vmatprep.subr.mxu0 0.0
      %404 = vmatpush1.msra.mxu0 0.0
      %405 = vmatprep.subr.mxu0 0.0
      %406 = vmatpush1.msra.mxu0 0.0
      %407 = vmatprep.subr.mxu0 0.0
      %408 = vmatpush1.msra.mxu0 0.0
      %409 = vmatprep.subr.mxu0 0.0
      %410 = vmatpush1.msra.mxu0 0.0
      %411 = vmatprep.subr.mxu0 0.0
      %412 = vmatpush1.msra.mxu0 %v399
      %413 = vmatprep.subr.mxu0 0.0
      %414 = vmatpush1.msra.mxu0 %v379
      %415 = vmatprep.subr.mxu0 0.0
      %416 = vmatpush1.msra.mxu0 %v377
      %417 = vmatprep.subr.mxu0 0.0
      %418 = vmatpush1.msra.mxu0 %v373
      %419 = vmatprep.subr.mxu0 0.0
      %420 = vmatpush1.msra.mxu0 %v371
      %421 = vmatprep.subr.mxu0 0.0
      %422 = vmatpush1.msra.mxu0 %v367
      %423 = vmatprep.subr.mxu0 0.0
      %424 = vmatpush1.msra.mxu0 %v365
      %425 = vmatprep.subr.mxu0 0.0
      %426 = vmatpush1.msra.mxu0 %v223
      %427 = vmatprep.subr.mxu0 0.0
      %428 = vmatpush1.msra.mxu0 %v221
      %429 = vmatprep.subr.mxu0 0.0
      %430 = vmatpush1.msra.mxu0 %v213
      %431 = vmatprep.subr.mxu0 0.0
      %432 = vmatpush1.msra.mxu0 %v212
      %433 = vmatprep.subr.mxu0 0.0
      %434 = vmatpush2.msra.mxu0 0.0
      %435 = vmatprep.subr.mxu0 0.0
      %436 = vmatpush2.msra.mxu0 0.0
      %437 = vmatprep.subr.mxu0 0.0
      %438 = vmatpush2.msra.mxu0 0.0
      %439 = vmatprep.subr.mxu0 0.0
      %440 = vmatpush2.msra.mxu0 0.0
      %441 = vmatprep.subr.mxu0 0.0
      %442 = vmatpush2.msra.mxu0 0.0
      %443 = vmatprep.subr.mxu0 0.0
      %444 = vmatpush2.msra.mxu0 0.0
      %445 = vmatprep.subr.mxu0 0.0
      %446 = vmatpush2.msra.mxu0 0.0
      %447 = vmatprep.subr.mxu0 0.0
      %448 = vmatpush2.msra.mxu0 0.0
      %449 = vmatprep.subr.mxu0 0.0
      %450 = vmatpush2.msra.mxu0 0.0
      %451 = vmatprep.subr.mxu0 0.0
      %452 = vmatpush2.msra.mxu0 0.0
      %453 = vmatprep.subr.mxu0 0.0
      %454 = vmatpush2.msra.mxu0 0.0
      %455 = vmatprep.subr.mxu0 0.0
      %456 = vmatpush2.msra.mxu0 0.0
      %457 = vmatprep.subr.mxu0 0.0
      %458 = vmatpush2.msra.mxu0 0.0
      %459 = vmatprep.subr.mxu0 0.0
      %460 = vmatpush2.msra.mxu0 0.0
      %461 = vmatprep.subr.mxu0 0.0
      %462 = vmatpush2.msra.mxu0 0.0
      %463 = vmatprep.subr.mxu0 0.0
      %464 = vmatpush2.msra.mxu0 0.0
      %465 = vmatprep.mubr.f32.mxu0 0.0
      %466 = vmatmul.mubr.f32.gmra.mxu0 %v388
      %v467 = vpop.f32.mrf.mxu0
      %v468 = vadd.f32 0.0, %v467
      %v469 = vpop.f32.mrf.mxu0
      %470 = vmatprep.mubr.f32.mxu0 0.0
      %471 = vmatmul.mubr.f32.gmra.mxu0 %v391
      %v472 = vpop.f32.mrf.mxu0
      %v473 = vadd.f32 0.0, %v472
      %v474 = vpop.f32.mrf.mxu0
      %475 = vmatprep.mubr.f32.mxu0 0.0
      %476 = vmatmul.mubr.f32.gmra.mxu0 %v394
      %v477 = vpop.f32.mrf.mxu0
      %v478 = vadd.f32 0.0, %v477
      %v479 = vpop.f32.mrf.mxu0
      %480 = vmatprep.mubr.f32.mxu0 0.0
      %481 = vmatmul.mubr.f32.gmra.mxu0 %v397
      %v482 = vpop.f32.mrf.mxu0
      %v483 = vadd.f32 0.0, %v482
      %v484 = vpop.f32.mrf.mxu0
      %485 = vdwg.mxu0
      %vm486 = vcmp.ge.f32.partialorder %v468, 0.0
      %vm487 = vcmp.ge.f32.partialorder %v473, 0.0
      %vm488 = vcmp.ge.f32.partialorder %v478, 0.0
      %vm489 = vcmp.ge.f32.partialorder %v483, 0.0
      %v490 = vmul.f32 %v468, 0.2
      %v491 = vmul.f32 %v473, 0.2
      %v492 = vmul.f32 %v478, 0.2
      %v493 = vmul.f32 %v483, 0.2
      %v494 = vsel %vm486, %v468, %v490
      %v495 = vsel %vm487, %v473, %v491
      %v496 = vsel %vm488, %v478, %v492
      %v497 = vsel %vm489, %v483, %v493
      %v498 = vadd.f32 %v358, %v494
      %v499 = vadd.f32 %v359, %v495
      %v500 = vadd.f32 %v360, %v496
      %v501 = vadd.f32 %v361, %v497
      %506 = vrot.lane.b32.xlu0 %v498, 4
      %v507 = vpop.permute.xlu0 %506
      %508 = vrot.lane.b32.xlu0 %v499, 4
      %v509 = vpop.permute.xlu0 %508
      %510 = vrot.lane.b32.xlu0 %v500, 4
      %v511 = vpop.permute.xlu0 %510
      %512 = vrot.lane.b32.xlu0 %v501, 4
      %v513 = vpop.permute.xlu0 %512
      %v518 = vsel %vm208, 0.0, %v507
      %v519 = vsel %vm208, 0.0, %v509
      %v520 = vsel %vm208, 0.0, %v511
      %v521 = vsel %vm208, 0.0, %v513
      %v522 = vsel %vm211, %v518, 0.0
      %v523 = vsel %vm211, %v519, 0.0
      %v524 = vsel %vm211, %v520, 0.0
      %v525 = vsel %vm211, %v521, 0.0
      %530 = vrot.lane.b32.xlu0 %v522, 127
      %v531 = vpop.permute.xlu0 %530
      %532 = vrot.lane.b32.xlu0 %v523, 127
      %v533 = vpop.permute.xlu0 %532
      %534 = vrot.lane.b32.xlu0 %v524, 127
      %v535 = vpop.permute.xlu0 %534
      %536 = vrot.lane.b32.xlu0 %v525, 127
      %v537 = vpop.permute.xlu0 %536
      %542 = vrot.lane.b32.xlu0 %v522, 126
      %v543 = vpop.permute.xlu0 %542
      %544 = vrot.lane.b32.xlu0 %v523, 126
      %v545 = vpop.permute.xlu0 %544
      %546 = vrot.lane.b32.xlu0 %v524, 126
      %v547 = vpop.permute.xlu0 %546
      %548 = vrot.lane.b32.xlu0 %v525, 126
      %v549 = vpop.permute.xlu0 %548
      %v554 = vld [vmem:[%s3] sm:$0xff]
      %v555 = vld [vmem:[%s3 + $0x8] sm:$0xff]
      %v556 = vld [vmem:[%s3 + $0x10] sm:$0xff]
      %v557 = vld [vmem:[%s3 + $0x18] sm:$0xff]
      %vm558 = vcmask 793600
      %v560 = vsel %vm558, %v554, 0
      %v563 = vsel %vm558, %v555, 0
      %v566 = vsel %vm558, %v556, 0
      %v569 = vsel %vm558, %v557, 0
      %571 = vmatprep.subr.mxu0 0.0
      %572 = vmatpush1.msra.mxu0 0.0
      %573 = vmatprep.subr.mxu0 0.0
      %574 = vmatpush1.msra.mxu0 0.0
      %575 = vmatprep.subr.mxu0 0.0
      %576 = vmatpush1.msra.mxu0 0.0
      %577 = vmatprep.subr.mxu0 0.0
      %578 = vmatpush1.msra.mxu0 %v399
      %579 = vmatprep.subr.mxu0 0.0
      %580 = vmatpush1.msra.mxu0 %v549
      %581 = vmatprep.subr.mxu0 0.0
      %582 = vmatpush1.msra.mxu0 %v547
      %583 = vmatprep.subr.mxu0 0.0
      %584 = vmatpush1.msra.mxu0 %v545
      %585 = vmatprep.subr.mxu0 0.0
      %586 = vmatpush1.msra.mxu0 %v543
      %587 = vmatprep.subr.mxu0 0.0
      %588 = vmatpush1.msra.mxu0 %v537
      %589 = vmatprep.subr.mxu0 0.0
      %590 = vmatpush1.msra.mxu0 %v535
      %591 = vmatprep.subr.mxu0 0.0
      %592 = vmatpush1.msra.mxu0 %v533
      %593 = vmatprep.subr.mxu0 0.0
      %594 = vmatpush1.msra.mxu0 %v531
      %595 = vmatprep.subr.mxu0 0.0
      %596 = vmatpush1.msra.mxu0 %v525
      %597 = vmatprep.subr.mxu0 0.0
      %598 = vmatpush1.msra.mxu0 %v524
      %599 = vmatprep.subr.mxu0 0.0
      %600 = vmatpush1.msra.mxu0 %v523
      %601 = vmatprep.subr.mxu0 0.0
      %602 = vmatpush1.msra.mxu0 %v522
      %603 = vmatprep.subr.mxu0 0.0
      %604 = vmatpush2.msra.mxu0 0.0
      %605 = vmatprep.subr.mxu0 0.0
      %606 = vmatpush2.msra.mxu0 0.0
      %607 = vmatprep.subr.mxu0 0.0
      %608 = vmatpush2.msra.mxu0 0.0
      %609 = vmatprep.subr.mxu0 0.0
      %610 = vmatpush2.msra.mxu0 0.0
      %611 = vmatprep.subr.mxu0 0.0
      %612 = vmatpush2.msra.mxu0 0.0
      %613 = vmatprep.subr.mxu0 0.0
      %614 = vmatpush2.msra.mxu0 0.0
      %615 = vmatprep.subr.mxu0 0.0
      %616 = vmatpush2.msra.mxu0 0.0
      %617 = vmatprep.subr.mxu0 0.0
      %618 = vmatpush2.msra.mxu0 0.0
      %619 = vmatprep.subr.mxu0 0.0
      %620 = vmatpush2.msra.mxu0 0.0
      %621 = vmatprep.subr.mxu0 0.0
      %622 = vmatpush2.msra.mxu0 0.0
      %623 = vmatprep.subr.mxu0 0.0
      %624 = vmatpush2.msra.mxu0 0.0
      %625 = vmatprep.subr.mxu0 0.0
      %626 = vmatpush2.msra.mxu0 0.0
      %627 = vmatprep.subr.mxu0 0.0
      %628 = vmatpush2.msra.mxu0 0.0
      %629 = vmatprep.subr.mxu0 0.0
      %630 = vmatpush2.msra.mxu0 0.0
      %631 = vmatprep.subr.mxu0 0.0
      %632 = vmatpush2.msra.mxu0 0.0
      %633 = vmatprep.subr.mxu0 0.0
      %634 = vmatpush2.msra.mxu0 0.0
      %635 = vmatprep.mubr.f32.mxu0 0.0
      %636 = vmatmul.mubr.f32.gmra.mxu0 %v560
      %v637 = vpop.f32.mrf.mxu0
      %v638 = vadd.f32 0.0, %v637
      %v639 = vpop.f32.mrf.mxu0
      %640 = vmatprep.mubr.f32.mxu0 0.0
      %641 = vmatmul.mubr.f32.gmra.mxu0 %v563
      %v642 = vpop.f32.mrf.mxu0
      %v643 = vadd.f32 0.0, %v642
      %v644 = vpop.f32.mrf.mxu0
      %645 = vmatprep.mubr.f32.mxu0 0.0
      %646 = vmatmul.mubr.f32.gmra.mxu0 %v566
      %v647 = vpop.f32.mrf.mxu0
      %v648 = vadd.f32 0.0, %v647
      %v649 = vpop.f32.mrf.mxu0
      %650 = vmatprep.mubr.f32.mxu0 0.0
      %651 = vmatmul.mubr.f32.gmra.mxu0 %v569
      %v652 = vpop.f32.mrf.mxu0
      %v653 = vadd.f32 0.0, %v652
      %v654 = vpop.f32.mrf.mxu0
      %655 = vdwg.mxu0
      %v656 = vlaneseq
      %v657 = vshrl.u32 %v656, 7
      %v658 = vadd.s32 %v657, 8
      %v659 = vadd.s32 %v657, 16
      %v660 = vadd.s32 %v657, 24
      %v661 = vadd.s32 %v657, 32
      %v662 = vadd.s32 %v657, 40
      %v663 = vlaneseq
      %v664 = vand.u32 %v663, 127
      %v665 = vmul.u32 %v664, 2
      %vm666 = vcmp.eq.s32.totalorder %v657, %v665
      %vm667 = vcmp.eq.s32.totalorder %v658, %v665
      %vm668 = vcmp.eq.s32.totalorder %v659, %v665
      %vm669 = vcmp.eq.s32.totalorder %v660, %v665
      %vm670 = vcmp.eq.s32.totalorder %v661, %v665
      %vm671 = vcmp.eq.s32.totalorder %v662, %v665
      %v672 = vsel %vm666, 1, 0
      %v673 = vsel %vm667, 1, 0
      %v674 = vsel %vm668, 1, 0
      %v675 = vsel %vm669, 1, 0
      %v676 = vsel %vm670, 1, 0
      %v677 = vsel %vm671, 1, 0
      %v678 = vcvt.s32.f32 %v672
      %v679 = vcvt.s32.f32 %v673
      %v680 = vcvt.s32.f32 %v674
      %v681 = vcvt.s32.f32 %v675
      %v682 = vcvt.s32.f32 %v676
      %v683 = vcvt.s32.f32 %v677
      %vm684 = vcmask 359424
      %v686 = vsel %vm684, %v638, 0
      %v689 = vsel %vm684, %v643, 0
      %v692 = vsel %vm684, %v648, 0
      %v695 = vsel %vm684, %v653, 0
      %vm697 = vcmask 1043456
      %v699 = vsel %vm697, %v683, 0
      %701 = vmatprep.subr.mxu0 0.0
      %702 = vmatpush1.msra.mxu0 0.0
      %703 = vmatprep.subr.mxu0 0.0
      %704 = vmatpush1.msra.mxu0 0.0
      %705 = vmatprep.subr.mxu0 0.0
      %706 = vmatpush1.msra.mxu0 0.0
      %707 = vmatprep.subr.mxu0 0.0
      %708 = vmatpush1.msra.mxu0 0.0
      %709 = vmatprep.subr.mxu0 0.0
      %710 = vmatpush1.msra.mxu0 0.0
      %711 = vmatprep.subr.mxu0 0.0
      %712 = vmatpush1.msra.mxu0 0.0
      %713 = vmatprep.subr.mxu0 0.0
      %714 = vmatpush1.msra.mxu0 0.0
      %715 = vmatprep.subr.mxu0 0.0
      %716 = vmatpush1.msra.mxu0 0.0
      %717 = vmatprep.subr.mxu0 0.0
      %718 = vmatpush1.msra.mxu0 0.0
      %719 = vmatprep.subr.mxu0 0.0
      %720 = vmatpush1.msra.mxu0 0.0
      %721 = vmatprep.subr.mxu0 0.0
      %722 = vmatpush1.msra.mxu0 %v699
      %723 = vmatprep.subr.mxu0 0.0
      %724 = vmatpush1.msra.mxu0 %v682
      %725 = vmatprep.subr.mxu0 0.0
      %726 = vmatpush1.msra.mxu0 %v681
      %727 = vmatprep.subr.mxu0 0.0
      %728 = vmatpush1.msra.mxu0 %v680
      %729 = vmatprep.subr.mxu0 0.0
      %730 = vmatpush1.msra.mxu0 %v679
      %731 = vmatprep.subr.mxu0 0.0
      %732 = vmatpush1.msra.mxu0 %v678
      %733 = vmatprep.subr.mxu0 0.0
      %734 = vmatpush2.msra.mxu0 0.0
      %735 = vmatprep.subr.mxu0 0.0
      %736 = vmatpush2.msra.mxu0 0.0
      %737 = vmatprep.subr.mxu0 0.0
      %738 = vmatpush2.msra.mxu0 0.0
      %739 = vmatprep.subr.mxu0 0.0
      %740 = vmatpush2.msra.mxu0 0.0
      %741 = vmatprep.subr.mxu0 0.0
      %742 = vmatpush2.msra.mxu0 0.0
      %743 = vmatprep.subr.mxu0 0.0
      %744 = vmatpush2.msra.mxu0 0.0
      %745 = vmatprep.subr.mxu0 0.0
      %746 = vmatpush2.msra.mxu0 0.0
      %747 = vmatprep.subr.mxu0 0.0
      %748 = vmatpush2.msra.mxu0 0.0
      %749 = vmatprep.subr.mxu0 0.0
      %750 = vmatpush2.msra.mxu0 0.0
      %751 = vmatprep.subr.mxu0 0.0
      %752 = vmatpush2.msra.mxu0 0.0
      %753 = vmatprep.subr.mxu0 0.0
      %754 = vmatpush2.msra.mxu0 0.0
      %755 = vmatprep.subr.mxu0 0.0
      %756 = vmatpush2.msra.mxu0 0.0
      %757 = vmatprep.subr.mxu0 0.0
      %758 = vmatpush2.msra.mxu0 0.0
      %759 = vmatprep.subr.mxu0 0.0
      %760 = vmatpush2.msra.mxu0 0.0
      %761 = vmatprep.subr.mxu0 0.0
      %762 = vmatpush2.msra.mxu0 0.0
      %763 = vmatprep.subr.mxu0 0.0
      %764 = vmatpush2.msra.mxu0 0.0
      %765 = vmatprep.mubr.f32.mxu0 0.0
      %766 = vmatmul.mubr.f32.gmra.mxu0 %v686
      %v767 = vpop.f32.mrf.mxu0
      %v768 = vadd.f32 0.0, %v767
      %v769 = vpop.f32.mrf.mxu0
      %770 = vmatprep.mubr.f32.mxu0 0.0
      %771 = vmatmul.mubr.f32.gmra.mxu0 %v689
      %v772 = vpop.f32.mrf.mxu0
      %v773 = vadd.f32 0.0, %v772
      %v774 = vpop.f32.mrf.mxu0
      %775 = vmatprep.mubr.f32.mxu0 0.0
      %776 = vmatmul.mubr.f32.gmra.mxu0 %v692
      %v777 = vpop.f32.mrf.mxu0
      %v778 = vadd.f32 0.0, %v777
      %v779 = vpop.f32.mrf.mxu0
      %780 = vmatprep.mubr.f32.mxu0 0.0
      %781 = vmatmul.mubr.f32.gmra.mxu0 %v695
      %v782 = vpop.f32.mrf.mxu0
      %v783 = vadd.f32 0.0, %v782
      %v784 = vpop.f32.mrf.mxu0
      %785 = vdwg.mxu0
      %vm786 = vcmp.ge.f32.partialorder %v768, 0.0
      %vm787 = vcmp.ge.f32.partialorder %v773, 0.0
      %vm788 = vcmp.ge.f32.partialorder %v778, 0.0
      %vm789 = vcmp.ge.f32.partialorder %v783, 0.0
      %v790 = vmul.f32 %v768, 0.2
      %v791 = vmul.f32 %v773, 0.2
      %v792 = vmul.f32 %v778, 0.2
      %v793 = vmul.f32 %v783, 0.2
      %v794 = vsel %vm786, %v768, %v790
      %v795 = vsel %vm787, %v773, %v791
      %v796 = vsel %vm788, %v778, %v792
      %v797 = vsel %vm789, %v783, %v793
      %vm798 = vcmask 179200
      %v799 = vsel %vm798, %v794, 0.0
      %v800 = vsel %vm798, %v795, 0.0
      %v801 = vsel %vm798, %v796, 0.0
      %v802 = vsel %vm798, %v797, 0.0
      %803 = vst [vmem:[%s197] sm:$0xff] %v799
      %804 = vst [vmem:[%s197 + $0x8] sm:$0xff] %v800
      %805 = vst [vmem:[%s197 + $0x10] sm:$0xff] %v801
      %806 = vst [vmem:[%s197 + $0x18] sm:$0xff] %v802
      %p807 = scmp.lt.s32.totalorder %s15, 1
      %s808 = scalar_select %p807, %s15, 1
      %s809 = smul.addr %s808, 4
      %s810 = smul.addr %s809, 8
      %s811 = scalar_lea.vmem %s4, %s810
      // Predicated region
      $region37: #{sbd_block_forward.4} parent=35 // pred_check
        %p812 = pneg %p122
      $region38: #{sbd_block_forward.4} parent=35 // pred_check_branch
        %814 = sbr.rel (%p812) target = $region40
      $region39: #{sbd_block_forward.4} parent=35 // pred_region
        _
      $region40: #{sbd_block_forward.4} parent=35 // pred_fallthru
        _
    $region36: #{sbd_block_forward.4} parent=5 // pred_fallthru
      _
    %p815 = scmp.le.s32.totalorder 2, %s10
    // Predicated region
    $region41: #{sbd_block_forward.4} parent=5 // pred_check
      %p816 = pneg %p815
    $region42: #{sbd_block_forward.4} parent=5 // pred_check_branch
      %818 = sbr.rel (%p816) target = $region44
    $region43: #{sbd_block_forward.4} parent=5 // pred_region
      %s819 = ssub.s32 %s10, 2
      // Predicated region
      $region45: #{sbd_block_forward.4} parent=43 // pred_check
        %p820 = pneg %p128
      $region46: #{sbd_block_forward.4} parent=43 // pred_check_branch
        %822 = sbr.rel (%p820) target = $region48
      $region47: #{sbd_block_forward.4} parent=43 // pred_region
        %p823 = scmp.lt.s32.totalorder %s16, 1
        %s824 = scalar_select %p823, %s16, 1
        %s825 = smul.addr %s824, 4
        %s826 = smul.addr %s825, 8
        %s827 = scalar_lea.vmem %s4, %s826
      $region48: #{sbd_block_forward.4} parent=43 // pred_fallthru
        _
    $region44: #{sbd_block_forward.4} parent=5 // pred_fallthru
      _
  $region6: #{sbd_block_forward.4} parent=0 // loop_footer
    %s14 = sadd.s32 1, %s10
  $region7: #{sbd_block_forward.4} parent=0 // loop_footer_branch
    %9 = sbr.rel target = $region3
  $region8: #{sbd_block_forward.4} parent=0 // loop_exit
    _

</llo_original>
